<compile_context>
chip_gen: v5e
topology: v5e:2x2
jax: 0.10.0
libtpu: 0.0.40
codegen_flags: <defaults>
</compile_context>

<pallas_src>
import functools

import jax
import jax.numpy as jnp
from jax.experimental import pallas as pl
from jax.experimental.pallas import tpu as pltpu


# -----------------------------------------------------------------------------
# Tiling helper
# -----------------------------------------------------------------------------
_VMEM_BUDGET = 12 * 1024 * 1024  # fits v5e's 16 MiB default scoped VMEM


def _pick_row_tile(n, per_row_cols, resident_cols, itemsize=4, cap=512):
    """Largest row tile (<= cap, multiple of 8) whose working set fits budget."""
    resident = resident_cols * itemsize
    avail = max(_VMEM_BUDGET - resident, 1 << 20)
    tm = min(cap, max(8, avail // max(per_row_cols * itemsize, 1)))
    if tm >= n:
        return n
    return max(8, (tm // 8) * 8)


# -----------------------------------------------------------------------------
# Kernels
# -----------------------------------------------------------------------------
def _linear_kernel(x_ref, w_ref, b_ref, o_ref, *, relu):
    # x: (tm, Din), w: (Din, Dout) pre-transposed on host, b: (1, Dout)
    y = jnp.dot(x_ref[...], w_ref[...], preferred_element_type=jnp.float32)
    y = y + b_ref[...]
    if relu:
        y = jnp.maximum(y, 0.0)
    o_ref[...] = y.astype(o_ref.dtype)


def _linear_add_ln_kernel(x_ref, w_ref, b_ref, res_ref, g_ref, bt_ref, o_ref, *, eps):
    # LayerNorm(residual + x @ w + b) fused in the matmul epilogue (VPU/EUP
    # work rides in slots that are idle while the MXU runs).
    y = jnp.dot(x_ref[...], w_ref[...], preferred_element_type=jnp.float32)
    y = y + b_ref[...]
    y = res_ref[...].astype(jnp.float32) + y
    mean = jnp.mean(y, axis=-1, keepdims=True)
    var = jnp.mean(jnp.square(y - mean), axis=-1, keepdims=True)
    yn = (y - mean) * jax.lax.rsqrt(var + eps)
    o_ref[...] = (yn * g_ref[...] + bt_ref[...]).astype(o_ref.dtype)


def _ffn_add_ln_kernel(x_ref, w1_ref, b1_ref, w2_ref, b2_ref, g_ref, bt_ref,
                       o_ref, *, eps):
    # LayerNorm(x + relu(x @ w1 + b1) @ w2 + b2) -- the (tm, F) intermediate
    # stays on-chip, never written to HBM.
    x = x_ref[...]
    h = jnp.dot(x, w1_ref[...], preferred_element_type=jnp.float32) + b1_ref[...]
    h = jnp.maximum(h, 0.0)
    y = jnp.dot(h.astype(x.dtype), w2_ref[...],
                preferred_element_type=jnp.float32)
    y = y + b2_ref[...]
    y = x.astype(jnp.float32) + y
    mean = jnp.mean(y, axis=-1, keepdims=True)
    var = jnp.mean(jnp.square(y - mean), axis=-1, keepdims=True)
    yn = (y - mean) * jax.lax.rsqrt(var + eps)
    o_ref[...] = (yn * g_ref[...] + bt_ref[...]).astype(o_ref.dtype)


def _attn_kernel(q_ref, k_ref, v_ref, ctx_ref, attn_ref, *, scale):
    # A group of Hb heads per grid step: blocks (Hb, S, d) / (Hb, S, S).
    q = q_ref[...]
    k = k_ref[...]
    v = v_ref[...]
    s = jnp.einsum("hqd,hkd->hqk", q, k,
                   preferred_element_type=jnp.float32) * scale
    s = s - jnp.max(s, axis=-1, keepdims=True)
    e = jnp.exp(s)
    denom = jnp.sum(e, axis=-1, keepdims=True)
    inv = pl.reciprocal(denom, approx=True)   # EUP slot (VALU divide avoided)
    inv = inv * (2.0 - denom * inv)           # one Newton step -> f32-accurate
    p = e * inv
    ctx = jnp.einsum("hqk,hkd->hqd", p.astype(v.dtype), v,
                     preferred_element_type=jnp.float32)
    ctx_ref[...] = ctx.astype(ctx_ref.dtype)
    attn_ref[...] = p.astype(attn_ref.dtype)


# -----------------------------------------------------------------------------
# pallas_call wrappers (row / head tiled, "parallel" grids)
# -----------------------------------------------------------------------------
def linear(x, w_t, b, relu=False):
    n, din = x.shape
    dout = w_t.shape[1]
    itemsize = int(x.dtype.itemsize)
    tm = _pick_row_tile(n, per_row_cols=2 * (din + dout),
                        resident_cols=din * dout + dout, itemsize=itemsize)
    cost = pl.CostEstimate(
        flops=int(2 * n * din * dout),
        transcendentals=0,
        bytes_accessed=int((n * din + din * dout + n * dout) * itemsize))
    return pl.pallas_call(
        functools.partial(_linear_kernel, relu=relu),
        out_shape=jax.ShapeDtypeStruct((n, dout), x.dtype),
        grid=(pl.cdiv(n, tm),),
        in_specs=[
            pl.BlockSpec((tm, din), lambda i: (i, 0)),
            pl.BlockSpec((din, dout), lambda i: (0, 0)),
            pl.BlockSpec((1, dout), lambda i: (0, 0)),
        ],
        out_specs=pl.BlockSpec((tm, dout), lambda i: (i, 0)),
        compiler_params=pltpu.CompilerParams(dimension_semantics=("parallel",)),
        cost_estimate=cost,
    )(x, w_t, b.reshape(1, dout))


def linear_add_ln(x, w_t, b, res, gamma, beta, eps=1e-5):
    n, din = x.shape
    dout = w_t.shape[1]
    itemsize = int(x.dtype.itemsize)
    tm = _pick_row_tile(n, per_row_cols=2 * (din + 2 * dout),
                        resident_cols=din * dout + 3 * dout, itemsize=itemsize)
    cost = pl.CostEstimate(
        flops=int(2 * n * din * dout + 8 * n * dout),
        transcendentals=int(n),
        bytes_accessed=int((n * din + din * dout + 2 * n * dout) * itemsize))
    return pl.pallas_call(
        functools.partial(_linear_add_ln_kernel, eps=eps),
        out_shape=jax.ShapeDtypeStruct((n, dout), x.dtype),
        grid=(pl.cdiv(n, tm),),
        in_specs=[
            pl.BlockSpec((tm, din), lambda i: (i, 0)),
            pl.BlockSpec((din, dout), lambda i: (0, 0)),
            pl.BlockSpec((1, dout), lambda i: (0, 0)),
            pl.BlockSpec((tm, dout), lambda i: (i, 0)),
            pl.BlockSpec((1, dout), lambda i: (0, 0)),
            pl.BlockSpec((1, dout), lambda i: (0, 0)),
        ],
        out_specs=pl.BlockSpec((tm, dout), lambda i: (i, 0)),
        compiler_params=pltpu.CompilerParams(dimension_semantics=("parallel",)),
        cost_estimate=cost,
    )(x, w_t, b.reshape(1, dout), res,
      gamma.reshape(1, dout), beta.reshape(1, dout))


def ffn_add_ln(x, w1_t, b1, w2_t, b2, gamma, beta, eps=1e-5):
    n, d = x.shape
    f = w1_t.shape[1]
    itemsize = int(x.dtype.itemsize)
    tm = _pick_row_tile(n, per_row_cols=2 * (2 * d) + f + d,
                        resident_cols=2 * d * f + f + 3 * d, itemsize=itemsize)
    cost = pl.CostEstimate(
        flops=int(4 * n * d * f + 8 * n * d),
        transcendentals=int(n),
        bytes_accessed=int((2 * n * d + 2 * d * f + f + 3 * d) * itemsize))
    return pl.pallas_call(
        functools.partial(_ffn_add_ln_kernel, eps=eps),
        out_shape=jax.ShapeDtypeStruct((n, d), x.dtype),
        grid=(pl.cdiv(n, tm),),
        in_specs=[
            pl.BlockSpec((tm, d), lambda i: (i, 0)),
            pl.BlockSpec((d, f), lambda i: (0, 0)),
            pl.BlockSpec((1, f), lambda i: (0, 0)),
            pl.BlockSpec((f, d), lambda i: (0, 0)),
            pl.BlockSpec((1, d), lambda i: (0, 0)),
            pl.BlockSpec((1, d), lambda i: (0, 0)),
            pl.BlockSpec((1, d), lambda i: (0, 0)),
        ],
        out_specs=pl.BlockSpec((tm, d), lambda i: (i, 0)),
        compiler_params=pltpu.CompilerParams(dimension_semantics=("parallel",)),
        cost_estimate=cost,
    )(x, w1_t, b1.reshape(1, f), w2_t, b2.reshape(1, d),
      gamma.reshape(1, d), beta.reshape(1, d))


def attention(qh, kh, vh, scale):
    bh, s, d = qh.shape
    hb = min(bh, 8)
    if bh >= 2 and pl.cdiv(bh, hb) < 2:
        hb = pl.cdiv(bh, 2)  # keep >= 2 parallel grid steps (both v7x TCs busy)
    itemsize = int(qh.dtype.itemsize)
    cost = pl.CostEstimate(
        flops=int(4 * bh * s * s * d),
        transcendentals=int(bh * s * s),
        bytes_accessed=int((4 * bh * s * d + bh * s * s) * itemsize))
    qkv_spec = pl.BlockSpec((hb, s, d), lambda i: (i, 0, 0))
    ctx, attn = pl.pallas_call(
        functools.partial(_attn_kernel, scale=scale),
        out_shape=(
            jax.ShapeDtypeStruct((bh, s, d), qh.dtype),
            jax.ShapeDtypeStruct((bh, s, s), qh.dtype),
        ),
        grid=(pl.cdiv(bh, hb),),
        in_specs=[qkv_spec, qkv_spec, qkv_spec],
        out_specs=(
            pl.BlockSpec((hb, s, d), lambda i: (i, 0, 0)),
            pl.BlockSpec((hb, s, s), lambda i: (i, 0, 0)),
        ),
        compiler_params=pltpu.CompilerParams(dimension_semantics=("parallel",)),
        cost_estimate=cost,
    )(qh, kh, vh)
    return ctx, attn


# -----------------------------------------------------------------------------
# Parameter packing (host-side, once): pre-transposed weights, fused QKV
# -----------------------------------------------------------------------------
def pack_params(p):
    return {
        "w_qkv": jnp.concatenate([p["wq"].T, p["wk"].T, p["wv"].T], axis=1),
        "b_qkv": jnp.concatenate([p["bq"], p["bk"], p["bv"]]),
        "wf_t": p["wf"].T, "bf": p["bf"],
        "ln1_g": p["ln1_g"], "ln1_b": p["ln1_b"],
        "w1_t": p["w1"].T, "b1": p["b1"],
        "w2_t": p["w2"].T, "b2": p["b2"],
        "ln2_g": p["ln2_g"], "ln2_b": p["ln2_b"],
    }


# -----------------------------------------------------------------------------
# EncoderLayer forward (glue in plain JAX, hot paths in Pallas)
# -----------------------------------------------------------------------------
# TODO(synk): attn_mask path (masked_fill with -inf) is not implemented; the
# module is exercised with attn_mask=None, and dropout=0.0 is an identity.
def encoder_layer_forward(x, pp, num_heads):
    B, S, D = x.shape
    H = num_heads
    dph = D // H
    N = B * S

    x2 = x.reshape(N, D)

    # ---- MultiHeadAttention ----
    qkv = linear(x2, pp["w_qkv"], pp["b_qkv"])           # fused Q/K/V: (N, 3D)
    q = qkv[:, :D]
    k = qkv[:, D:2 * D]
    v = qkv[:, 2 * D:]

    # torch: .view(batch*num_heads, -1, dim_per_head) on a contiguous (B,S,D)
    qh = q.reshape(B * H, S, dph)
    kh = k.reshape(B * H, S, dph)
    vh = v.reshape(B * H, S, dph)

    # torch: scale = (key.size(-1) // num_heads) ** (-0.5)  (quirk replicated)
    scale = float((dph // H) ** (-0.5))

    ctx_h, attn = attention(qh, kh, vh, scale)
    ctx = ctx_h.reshape(N, D)

    # final projection + residual-add + LayerNorm, fused in one kernel
    attn_out = linear_add_ln(ctx, pp["wf_t"], pp["bf"], x2,
                             pp["ln1_g"], pp["ln1_b"])

    # ---- PositionalWiseFeedForward (Conv1d k=1 == pointwise linear), fused
    #      w1 -> relu -> w2 -> residual-add -> LayerNorm in one kernel ----
    ffn_out = ffn_add_ln(attn_out, pp["w1_t"], pp["b1"], pp["w2_t"], pp["b2"],
                         pp["ln2_g"], pp["ln2_b"])

    return ffn_out.reshape(B, S, D), attn


# -----------------------------------------------------------------------------
# Deterministic parameter init (synthetic; shapes from module __init__)
# -----------------------------------------------------------------------------
def init_params(key, model_dim, num_heads, ffn_dim):
    ks = jax.random.split(key, 12)

    def u(k, shape, fan_in):
        bound = 1.0 / jnp.sqrt(fan_in)
        return jax.random.uniform(k, shape, jnp.float32, -bound, bound)

    D, F = model_dim, ffn_dim
    return {
        "wq": u(ks[0], (D, D), D), "bq": u(ks[1], (D,), D),
        "wk": u(ks[2], (D, D), D), "bk": u(ks[3], (D,), D),
        "wv": u(ks[4], (D, D), D), "bv": u(ks[5], (D,), D),
        "wf": u(ks[6], (D, D), D), "bf": u(ks[7], (D,), D),
        "ln1_g": jnp.ones((D,), jnp.float32), "ln1_b": jnp.zeros((D,), jnp.float32),
        # Conv1d weights (ffn_dim, model_dim, 1) with kernel dim squeezed.
        "w1": u(ks[8], (F, D), D), "b1": u(ks[9], (F,), D),
        "w2": u(ks[10], (D, F), F), "b2": u(ks[11], (D,), F),
        "ln2_g": jnp.ones((D,), jnp.float32), "ln2_b": jnp.zeros((D,), jnp.float32),
    }


# -----------------------------------------------------------------------------
# Pure-JAX reference (mirrors the PyTorch module, including its quirks)
# -----------------------------------------------------------------------------
def reference_forward(x, p, num_heads, eps=1e-5):
    B, S, D = x.shape
    H = num_heads
    dph = D // H
    x2 = x.reshape(B * S, D)
    q = x2 @ p["wq"].T + p["bq"]
    k = x2 @ p["wk"].T + p["bk"]
    v = x2 @ p["wv"].T + p["bv"]
    qh = q.reshape(B * H, S, dph)
    kh = k.reshape(B * H, S, dph)
    vh = v.reshape(B * H, S, dph)
    scale = float((dph // H) ** (-0.5))
    s = jnp.einsum("bqd,bkd->bqk", qh, kh) * scale
    attn = jax.nn.softmax(s, axis=-1)
    ctx = jnp.einsum("bqk,bkd->bqd", attn, vh).reshape(B * S, D)
    mha = ctx @ p["wf"].T + p["bf"]

    def ln(y, g, b):
        m = jnp.mean(y, -1, keepdims=True)
        var = jnp.mean(jnp.square(y - m), -1, keepdims=True)
        return (y - m) * jax.lax.rsqrt(var + eps) * g + b

    a = ln(x2 + mha, p["ln1_g"], p["ln1_b"])
    h = jnp.maximum(a @ p["w1"].T + p["b1"], 0.0)
    f = ln(a + h @ p["w2"].T + p["b2"], p["ln2_g"], p["ln2_b"])
    return f.reshape(B, S, D), attn


if __name__ == "__main__":
    B, S, D, H, F = 2, 8, 32, 4, 64  # dim_per_head = 8 (>= num_heads, as torch requires)

    key = jax.random.PRNGKey(0)
    k_x, k_p = jax.random.split(key)
    x = jax.random.normal(k_x, (B, S, D), jnp.float32)
    params = init_params(k_p, D, H, F)
    packed = pack_params(params)

    fwd = jax.jit(functools.partial(encoder_layer_forward, num_heads=H))
    out, attn = fwd(x, packed)
    jax.block_until_ready((out, attn))

    assert out.shape == (B, S, D)
    assert attn.shape == (B * H, S, S)
    # softmax rows must sum to 1
    assert jnp.allclose(jnp.sum(attn, axis=-1), 1.0, atol=1e-4)

    # check against the pure-JAX reference
    ref_out, ref_attn = reference_forward(x, params, H)
    assert jnp.allclose(out, ref_out, atol=2e-3, rtol=2e-3)
    assert jnp.allclose(attn, ref_attn, atol=2e-3, rtol=2e-3)

    print("KERNEL_OK")
</pallas_src>

<mosaic_0001>
module attributes {stable_mosaic.version = 11 : i64} {
  func.func @_linear_kernel(%arg0: i32, %arg1: memref<16x32xf32, #tpu.memory_space<vmem>>, %arg2: memref<32x96xf32, #tpu.memory_space<vmem>>, %arg3: memref<1x96xf32, #tpu.memory_space<vmem>>, %arg4: memref<16x96xf32, #tpu.memory_space<vmem>>) attributes {dimension_semantics = [#tpu.dimension_semantics<parallel>], iteration_bounds = array<i64: 1>, scalar_prefetch = 0 : i64, scratch_operands = 0 : i64, tpu.core_type = #tpu.core_type<tc>, window_params = [{transform_indices = @transform_0, window_bounds = array<i64: 16, 32>}, {pipeline_mode = #tpu.pipeline_mode<synchronous>, transform_indices = @transform_1, window_bounds = array<i64: 32, 96>}, {pipeline_mode = #tpu.pipeline_mode<synchronous>, transform_indices = @transform_2, window_bounds = array<i64: 1, 96>}, {transform_indices = @transform_3, window_bounds = array<i64: 16, 96>}]} {
    %c0 = arith.constant 0 : index
    %c0_0 = arith.constant 0 : index
    %0 = vector.load %arg1[%c0, %c0_0] : memref<16x32xf32, #tpu.memory_space<vmem>>, vector<16x32xf32>
    %c0_1 = arith.constant 0 : index
    %c0_2 = arith.constant 0 : index
    %1 = vector.load %arg2[%c0_1, %c0_2] : memref<32x96xf32, #tpu.memory_space<vmem>>, vector<32x96xf32>
    %cst = arith.constant dense<0.000000e+00> : vector<16x96xf32>
    %2 = tpu.matmul %0, %1, %cst {dimension_numbers = #tpu.dot_dimension_numbers<[1], [0], [0], [1], [0, 0, 1, 1], [], []>} : vector<16x32xf32>, vector<32x96xf32>, vector<16x96xf32> -> vector<16x96xf32>
    %c0_3 = arith.constant 0 : index
    %c0_4 = arith.constant 0 : index
    %3 = vector.load %arg3[%c0_3, %c0_4] : memref<1x96xf32, #tpu.memory_space<vmem>>, vector<1x96xf32>
    %4 = vector.broadcast %3 : vector<1x96xf32> to vector<16x96xf32>
    %5 = arith.addf %2, %4 : vector<16x96xf32>
    %c0_5 = arith.constant 0 : index
    %c0_6 = arith.constant 0 : index
    %6 = vector.load %arg4[%c0_5, %c0_6] : memref<16x96xf32, #tpu.memory_space<vmem>>, vector<16x96xf32>
    tpu.vector_store %arg4[%c0_5, %c0_6], %5 {strides = array<i32>} : memref<16x96xf32, #tpu.memory_space<vmem>>, vector<16x96xf32>,
    return
  }
  func.func @transform_0(%arg0: i32) -> (i32, i32) {
    %c0_i32 = arith.constant 0 : i32
    %c0_i32_0 = arith.constant 0 : i32
    return %arg0, %c0_i32 : i32, i32
  }
  func.func @transform_1(%arg0: i32) -> (i32, i32) {
    %c0_i32 = arith.constant 0 : i32
    %c0_i32_0 = arith.constant 0 : i32
    %c0_i32_1 = arith.constant 0 : i32
    return %c0_i32, %c0_i32_0 : i32, i32
  }
  func.func @transform_2(%arg0: i32) -> (i32, i32) {
    %c0_i32 = arith.constant 0 : i32
    %c0_i32_0 = arith.constant 0 : i32
    %c0_i32_1 = arith.constant 0 : i32
    return %c0_i32, %c0_i32_0 : i32, i32
  }
  func.func @transform_3(%arg0: i32) -> (i32, i32) {
    %c0_i32 = arith.constant 0 : i32
    %c0_i32_0 = arith.constant 0 : i32
    return %arg0, %c0_i32 : i32, i32
  }
}

module attributes {stable_mosaic.version = 11 : i64} {
  func.func @_attn_kernel(%arg0: i32, %arg1: memref<4x8x8xf32, #tpu.memory_space<vmem>>, %arg2: memref<4x8x8xf32, #tpu.memory_space<vmem>>, %arg3: memref<4x8x8xf32, #tpu.memory_space<vmem>>, %arg4: memref<4x8x8xf32, #tpu.memory_space<vmem>>, %arg5: memref<4x8x8xf32, #tpu.memory_space<vmem>>) attributes {dimension_semantics = [#tpu.dimension_semantics<parallel>], iteration_bounds = array<i64: 2>, scalar_prefetch = 0 : i64, scratch_operands = 0 : i64, tpu.core_type = #tpu.core_type<tc>, window_params = [{transform_indices = @transform_0, window_bounds = array<i64: 4, 8, 8>}, {transform_indices = @transform_1, window_bounds = array<i64: 4, 8, 8>}, {transform_indices = @transform_2, window_bounds = array<i64: 4, 8, 8>}, {transform_indices = @transform_3, window_bounds = array<i64: 4, 8, 8>}, {transform_indices = @transform_4, window_bounds = array<i64: 4, 8, 8>}]} {
    %c0 = arith.constant 0 : index
    %c0_0 = arith.constant 0 : index
    %c0_1 = arith.constant 0 : index
    %0 = vector.load %arg1[%c0, %c0_0, %c0_1] : memref<4x8x8xf32, #tpu.memory_space<vmem>>, vector<4x8x8xf32>
    %c0_2 = arith.constant 0 : index
    %c0_3 = arith.constant 0 : index
    %c0_4 = arith.constant 0 : index
    %1 = vector.load %arg2[%c0_2, %c0_3, %c0_4] : memref<4x8x8xf32, #tpu.memory_space<vmem>>, vector<4x8x8xf32>
    %c0_5 = arith.constant 0 : index
    %c0_6 = arith.constant 0 : index
    %c0_7 = arith.constant 0 : index
    %2 = vector.load %arg3[%c0_5, %c0_6, %c0_7] : memref<4x8x8xf32, #tpu.memory_space<vmem>>, vector<4x8x8xf32>
    "tpu.trace_start"() <{level = 10 : i32, message = "hqd,hkd->hqk"}> : () -> ()
    %cst = arith.constant dense<0.000000e+00> : vector<4x8x8xf32>
    %3 = tpu.matmul %0, %1, %cst {dimension_numbers = #tpu.dot_dimension_numbers<[2], [2], [1], [1], [0, 0, 0, 1, 1, 1], [0], [0]>} : vector<4x8x8xf32>, vector<4x8x8xf32>, vector<4x8x8xf32> -> vector<4x8x8xf32>
    "tpu.trace_stop"() : () -> ()
    %cst_8 = arith.constant 0.707106769 : f32
    %4 = vector.broadcast %cst_8 : f32 to vector<4x8x8xf32>
    %5 = arith.mulf %3, %4 : vector<4x8x8xf32>
    %cst_9 = arith.constant dense<0xFF800000> : vector<4x8xf32>
    %6 = vector.multi_reduction <maximumf>, %5, %cst_9 [2] : vector<4x8x8xf32> to vector<4x8xf32>
    %7 = vector.shape_cast %6 : vector<4x8xf32> to vector<4x8x1xf32>
    %8 = vector.broadcast %7 : vector<4x8x1xf32> to vector<4x8x8xf32>
    %9 = arith.subf %5, %8 : vector<4x8x8xf32>
    %10 = math.exp %9 : vector<4x8x8xf32>
    %cst_10 = arith.constant dense<0.000000e+00> : vector<4x8xf32>
    %11 = vector.multi_reduction <add>, %10, %cst_10 [2] : vector<4x8x8xf32> to vector<4x8xf32>
    %12 = vector.shape_cast %11 : vector<4x8xf32> to vector<4x8x1xf32>
    %13 = tpu.reciprocal %12 {approx = true} : vector<4x8x1xf32> -> vector<4x8x1xf32>
    %14 = arith.mulf %12, %13 : vector<4x8x1xf32>
    %cst_11 = arith.constant 2.000000e+00 : f32
    %15 = vector.broadcast %cst_11 : f32 to vector<4x8x1xf32>
    %16 = arith.subf %15, %14 : vector<4x8x1xf32>
    %17 = arith.mulf %13, %16 : vector<4x8x1xf32>
    %18 = vector.broadcast %17 : vector<4x8x1xf32> to vector<4x8x8xf32>
    %19 = arith.mulf %10, %18 : vector<4x8x8xf32>
    "tpu.trace_start"() <{level = 10 : i32, message = "hqk,hkd->hqd"}> : () -> ()
    %cst_12 = arith.constant dense<0.000000e+00> : vector<4x8x8xf32>
    %20 = tpu.matmul %19, %2, %cst_12 {dimension_numbers = #tpu.dot_dimension_numbers<[2], [1], [1], [2], [0, 0, 0, 1, 1, 2], [0], [0]>} : vector<4x8x8xf32>, vector<4x8x8xf32>, vector<4x8x8xf32> -> vector<4x8x8xf32>
    "tpu.trace_stop"() : () -> ()
    %c0_13 = arith.constant 0 : index
    %c0_14 = arith.constant 0 : index
    %c0_15 = arith.constant 0 : index
    %21 = vector.load %arg4[%c0_13, %c0_14, %c0_15] : memref<4x8x8xf32, #tpu.memory_space<vmem>>, vector<4x8x8xf32>
    tpu.vector_store %arg4[%c0_13, %c0_14, %c0_15], %20 {strides = array<i32>} : memref<4x8x8xf32, #tpu.memory_space<vmem>>, vector<4x8x8xf32>,
    %c0_16 = arith.constant 0 : index
    %c0_17 = arith.constant 0 : index
    %c0_18 = arith.constant 0 : index
    %22 = vector.load %arg5[%c0_16, %c0_17, %c0_18] : memref<4x8x8xf32, #tpu.memory_space<vmem>>, vector<4x8x8xf32>
    tpu.vector_store %arg5[%c0_16, %c0_17, %c0_18], %19 {strides = array<i32>} : memref<4x8x8xf32, #tpu.memory_space<vmem>>, vector<4x8x8xf32>,
    return
  }
  func.func @transform_0(%arg0: i32) -> (i32, i32, i32) {
    %c0_i32 = arith.constant 0 : i32
    %c0_i32_0 = arith.constant 0 : i32
    %c0_i32_1 = arith.constant 0 : i32
    return %arg0, %c0_i32, %c0_i32_0 : i32, i32, i32
  }
  func.func @transform_1(%arg0: i32) -> (i32, i32, i32) {
    %c0_i32 = arith.constant 0 : i32
    %c0_i32_0 = arith.constant 0 : i32
    %c0_i32_1 = arith.constant 0 : i32
    return %arg0, %c0_i32, %c0_i32_0 : i32, i32, i32
  }
  func.func @transform_2(%arg0: i32) -> (i32, i32, i32) {
    %c0_i32 = arith.constant 0 : i32
    %c0_i32_0 = arith.constant 0 : i32
    %c0_i32_1 = arith.constant 0 : i32
    return %arg0, %c0_i32, %c0_i32_0 : i32, i32, i32
  }
  func.func @transform_3(%arg0: i32) -> (i32, i32, i32) {
    %c0_i32 = arith.constant 0 : i32
    %c0_i32_0 = arith.constant 0 : i32
    %c0_i32_1 = arith.constant 0 : i32
    return %arg0, %c0_i32, %c0_i32_0 : i32, i32, i32
  }
  func.func @transform_4(%arg0: i32) -> (i32, i32, i32) {
    %c0_i32 = arith.constant 0 : i32
    %c0_i32_0 = arith.constant 0 : i32
    %c0_i32_1 = arith.constant 0 : i32
    return %arg0, %c0_i32, %c0_i32_0 : i32, i32, i32
  }
}

module attributes {stable_mosaic.version = 11 : i64} {
  func.func @_ffn_add_ln_kernel(%arg0: i32, %arg1: memref<16x32xf32, #tpu.memory_space<vmem>>, %arg2: memref<32x64xf32, #tpu.memory_space<vmem>>, %arg3: memref<1x64xf32, #tpu.memory_space<vmem>>, %arg4: memref<64x32xf32, #tpu.memory_space<vmem>>, %arg5: memref<1x32xf32, #tpu.memory_space<vmem>>, %arg6: memref<1x32xf32, #tpu.memory_space<vmem>>, %arg7: memref<1x32xf32, #tpu.memory_space<vmem>>, %arg8: memref<16x32xf32, #tpu.memory_space<vmem>>) attributes {dimension_semantics = [#tpu.dimension_semantics<parallel>], iteration_bounds = array<i64: 1>, scalar_prefetch = 0 : i64, scratch_operands = 0 : i64, tpu.core_type = #tpu.core_type<tc>, window_params = [{transform_indices = @transform_0, window_bounds = array<i64: 16, 32>}, {pipeline_mode = #tpu.pipeline_mode<synchronous>, transform_indices = @transform_1, window_bounds = array<i64: 32, 64>}, {pipeline_mode = #tpu.pipeline_mode<synchronous>, transform_indices = @transform_2, window_bounds = array<i64: 1, 64>}, {pipeline_mode = #tpu.pipeline_mode<synchronous>, transform_indices = @transform_3, window_bounds = array<i64: 64, 32>}, {pipeline_mode = #tpu.pipeline_mode<synchronous>, transform_indices = @transform_4, window_bounds = array<i64: 1, 32>}, {pipeline_mode = #tpu.pipeline_mode<synchronous>, transform_indices = @transform_5, window_bounds = array<i64: 1, 32>}, {pipeline_mode = #tpu.pipeline_mode<synchronous>, transform_indices = @transform_6, window_bounds = array<i64: 1, 32>}, {transform_indices = @transform_7, window_bounds = array<i64: 16, 32>}]} {
    %c0 = arith.constant 0 : index
    %c0_0 = arith.constant 0 : index
    %0 = vector.load %arg1[%c0, %c0_0] : memref<16x32xf32, #tpu.memory_space<vmem>>, vector<16x32xf32>
    %c0_1 = arith.constant 0 : index
    %c0_2 = arith.constant 0 : index
    %1 = vector.load %arg2[%c0_1, %c0_2] : memref<32x64xf32, #tpu.memory_space<vmem>>, vector<32x64xf32>
    %cst = arith.constant dense<0.000000e+00> : vector<16x64xf32>
    %2 = tpu.matmul %0, %1, %cst {dimension_numbers = #tpu.dot_dimension_numbers<[1], [0], [0], [1], [0, 0, 1, 1], [], []>} : vector<16x32xf32>, vector<32x64xf32>, vector<16x64xf32> -> vector<16x64xf32>
    %c0_3 = arith.constant 0 : index
    %c0_4 = arith.constant 0 : index
    %3 = vector.load %arg3[%c0_3, %c0_4] : memref<1x64xf32, #tpu.memory_space<vmem>>, vector<1x64xf32>
    %4 = vector.broadcast %3 : vector<1x64xf32> to vector<16x64xf32>
    %5 = arith.addf %2, %4 : vector<16x64xf32>
    %cst_5 = arith.constant 0.000000e+00 : f32
    %6 = vector.broadcast %cst_5 : f32 to vector<16x64xf32>
    %7 = arith.maximumf %5, %6 : vector<16x64xf32>
    %c0_6 = arith.constant 0 : index
    %c0_7 = arith.constant 0 : index
    %8 = vector.load %arg4[%c0_6, %c0_7] : memref<64x32xf32, #tpu.memory_space<vmem>>, vector<64x32xf32>
    %cst_8 = arith.constant dense<0.000000e+00> : vector<16x32xf32>
    %9 = tpu.matmul %7, %8, %cst_8 {dimension_numbers = #tpu.dot_dimension_numbers<[1], [0], [0], [1], [0, 0, 1, 1], [], []>} : vector<16x64xf32>, vector<64x32xf32>, vector<16x32xf32> -> vector<16x32xf32>
    %c0_9 = arith.constant 0 : index
    %c0_10 = arith.constant 0 : index
    %10 = vector.load %arg5[%c0_9, %c0_10] : memref<1x32xf32, #tpu.memory_space<vmem>>, vector<1x32xf32>
    %11 = vector.broadcast %10 : vector<1x32xf32> to vector<16x32xf32>
    %12 = arith.addf %9, %11 : vector<16x32xf32>
    %13 = arith.addf %0, %12 : vector<16x32xf32>
    %cst_11 = arith.constant dense<0.000000e+00> : vector<16xf32>
    %14 = vector.multi_reduction <add>, %13, %cst_11 [1] : vector<16x32xf32> to vector<16xf32>
    %15 = vector.shape_cast %14 : vector<16xf32> to vector<16x1xf32>
    %cst_12 = arith.constant 3.200000e+01 : f32
    %16 = vector.broadcast %cst_12 : f32 to vector<16x1xf32>
    %17 = arith.divf %15, %16 : vector<16x1xf32>
    %18 = vector.broadcast %17 : vector<16x1xf32> to vector<16x32xf32>
    %19 = arith.subf %13, %18 : vector<16x32xf32>
    %20 = arith.mulf %19, %19 : vector<16x32xf32>
    %cst_13 = arith.constant dense<0.000000e+00> : vector<16xf32>
    %21 = vector.multi_reduction <add>, %20, %cst_13 [1] : vector<16x32xf32> to vector<16xf32>
    %22 = vector.shape_cast %21 : vector<16xf32> to vector<16x1xf32>
    %cst_14 = arith.constant 3.200000e+01 : f32
    %23 = vector.broadcast %cst_14 : f32 to vector<16x1xf32>
    %24 = arith.divf %22, %23 : vector<16x1xf32>
    %25 = vector.broadcast %17 : vector<16x1xf32> to vector<16x32xf32>
    %26 = arith.subf %13, %25 : vector<16x32xf32>
    %cst_15 = arith.constant 9.99999974E-6 : f32
    %27 = vector.broadcast %cst_15 : f32 to vector<16x1xf32>
    %28 = arith.addf %24, %27 : vector<16x1xf32>
    %29 = math.rsqrt %28 : vector<16x1xf32>
    %30 = vector.broadcast %29 : vector<16x1xf32> to vector<16x32xf32>
    %31 = arith.mulf %26, %30 : vector<16x32xf32>
    %c0_16 = arith.constant 0 : index
    %c0_17 = arith.constant 0 : index
    %32 = vector.load %arg6[%c0_16, %c0_17] : memref<1x32xf32, #tpu.memory_space<vmem>>, vector<1x32xf32>
    %33 = vector.broadcast %32 : vector<1x32xf32> to vector<16x32xf32>
    %34 = arith.mulf %31, %33 : vector<16x32xf32>
    %c0_18 = arith.constant 0 : index
    %c0_19 = arith.constant 0 : index
    %35 = vector.load %arg7[%c0_18, %c0_19] : memref<1x32xf32, #tpu.memory_space<vmem>>, vector<1x32xf32>
    %36 = vector.broadcast %35 : vector<1x32xf32> to vector<16x32xf32>
    %37 = arith.addf %34, %36 : vector<16x32xf32>
    %c0_20 = arith.constant 0 : index
    %c0_21 = arith.constant 0 : index
    %38 = vector.load %arg8[%c0_20, %c0_21] : memref<16x32xf32, #tpu.memory_space<vmem>>, vector<16x32xf32>
    tpu.vector_store %arg8[%c0_20, %c0_21], %37 {strides = array<i32>} : memref<16x32xf32, #tpu.memory_space<vmem>>, vector<16x32xf32>,
    return
  }
  func.func @transform_0(%arg0: i32) -> (i32, i32) {
    %c0_i32 = arith.constant 0 : i32
    %c0_i32_0 = arith.constant 0 : i32
    return %arg0, %c0_i32 : i32, i32
  }
  func.func @transform_1(%arg0: i32) -> (i32, i32) {
    %c0_i32 = arith.constant 0 : i32
    %c0_i32_0 = arith.constant 0 : i32
    %c0_i32_1 = arith.constant 0 : i32
    return %c0_i32, %c0_i32_0 : i32, i32
  }
  func.func @transform_2(%arg0: i32) -> (i32, i32) {
    %c0_i32 = arith.constant 0 : i32
    %c0_i32_0 = arith.constant 0 : i32
    %c0_i32_1 = arith.constant 0 : i32
    return %c0_i32, %c0_i32_0 : i32, i32
  }
  func.func @transform_3(%arg0: i32) -> (i32, i32) {
    %c0_i32 = arith.constant 0 : i32
    %c0_i32_0 = arith.constant 0 : i32
    %c0_i32_1 = arith.constant 0 : i32
    return %c0_i32, %c0_i32_0 : i32, i32
  }
  func.func @transform_4(%arg0: i32) -> (i32, i32) {
    %c0_i32 = arith.constant 0 : i32
    %c0_i32_0 = arith.constant 0 : i32
    %c0_i32_1 = arith.constant 0 : i32
    return %c0_i32, %c0_i32_0 : i32, i32
  }
  func.func @transform_5(%arg0: i32) -> (i32, i32) {
    %c0_i32 = arith.constant 0 : i32
    %c0_i32_0 = arith.constant 0 : i32
    %c0_i32_1 = arith.constant 0 : i32
    return %c0_i32, %c0_i32_0 : i32, i32
  }
  func.func @transform_6(%arg0: i32) -> (i32, i32) {
    %c0_i32 = arith.constant 0 : i32
    %c0_i32_0 = arith.constant 0 : i32
    %c0_i32_1 = arith.constant 0 : i32
    return %c0_i32, %c0_i32_0 : i32, i32
  }
  func.func @transform_7(%arg0: i32) -> (i32, i32) {
    %c0_i32 = arith.constant 0 : i32
    %c0_i32_0 = arith.constant 0 : i32
    return %arg0, %c0_i32 : i32, i32
  }
}

module attributes {stable_mosaic.version = 11 : i64} {
  func.func @_linear_add_ln_kernel(%arg0: i32, %arg1: memref<16x32xf32, #tpu.memory_space<vmem>>, %arg2: memref<32x32xf32, #tpu.memory_space<vmem>>, %arg3: memref<1x32xf32, #tpu.memory_space<vmem>>, %arg4: memref<16x32xf32, #tpu.memory_space<vmem>>, %arg5: memref<1x32xf32, #tpu.memory_space<vmem>>, %arg6: memref<1x32xf32, #tpu.memory_space<vmem>>, %arg7: memref<16x32xf32, #tpu.memory_space<vmem>>) attributes {dimension_semantics = [#tpu.dimension_semantics<parallel>], iteration_bounds = array<i64: 1>, scalar_prefetch = 0 : i64, scratch_operands = 0 : i64, tpu.core_type = #tpu.core_type<tc>, window_params = [{transform_indices = @transform_0, window_bounds = array<i64: 16, 32>}, {pipeline_mode = #tpu.pipeline_mode<synchronous>, transform_indices = @transform_1, window_bounds = array<i64: 32, 32>}, {pipeline_mode = #tpu.pipeline_mode<synchronous>, transform_indices = @transform_2, window_bounds = array<i64: 1, 32>}, {transform_indices = @transform_3, window_bounds = array<i64: 16, 32>}, {pipeline_mode = #tpu.pipeline_mode<synchronous>, transform_indices = @transform_4, window_bounds = array<i64: 1, 32>}, {pipeline_mode = #tpu.pipeline_mode<synchronous>, transform_indices = @transform_5, window_bounds = array<i64: 1, 32>}, {transform_indices = @transform_6, window_bounds = array<i64: 16, 32>}]} {
    %c0 = arith.constant 0 : index
    %c0_0 = arith.constant 0 : index
    %0 = vector.load %arg1[%c0, %c0_0] : memref<16x32xf32, #tpu.memory_space<vmem>>, vector<16x32xf32>
    %c0_1 = arith.constant 0 : index
    %c0_2 = arith.constant 0 : index
    %1 = vector.load %arg2[%c0_1, %c0_2] : memref<32x32xf32, #tpu.memory_space<vmem>>, vector<32x32xf32>
    %cst = arith.constant dense<0.000000e+00> : vector<16x32xf32>
    %2 = tpu.matmul %0, %1, %cst {dimension_numbers = #tpu.dot_dimension_numbers<[1], [0], [0], [1], [0, 0, 1, 1], [], []>} : vector<16x32xf32>, vector<32x32xf32>, vector<16x32xf32> -> vector<16x32xf32>
    %c0_3 = arith.constant 0 : index
    %c0_4 = arith.constant 0 : index
    %3 = vector.load %arg3[%c0_3, %c0_4] : memref<1x32xf32, #tpu.memory_space<vmem>>, vector<1x32xf32>
    %4 = vector.broadcast %3 : vector<1x32xf32> to vector<16x32xf32>
    %5 = arith.addf %2, %4 : vector<16x32xf32>
    %c0_5 = arith.constant 0 : index
    %c0_6 = arith.constant 0 : index
    %6 = vector.load %arg4[%c0_5, %c0_6] : memref<16x32xf32, #tpu.memory_space<vmem>>, vector<16x32xf32>
    %7 = arith.addf %6, %5 : vector<16x32xf32>
    %cst_7 = arith.constant dense<0.000000e+00> : vector<16xf32>
    %8 = vector.multi_reduction <add>, %7, %cst_7 [1] : vector<16x32xf32> to vector<16xf32>
    %9 = vector.shape_cast %8 : vector<16xf32> to vector<16x1xf32>
    %cst_8 = arith.constant 3.200000e+01 : f32
    %10 = vector.broadcast %cst_8 : f32 to vector<16x1xf32>
    %11 = arith.divf %9, %10 : vector<16x1xf32>
    %12 = vector.broadcast %11 : vector<16x1xf32> to vector<16x32xf32>
    %13 = arith.subf %7, %12 : vector<16x32xf32>
    %14 = arith.mulf %13, %13 : vector<16x32xf32>
    %cst_9 = arith.constant dense<0.000000e+00> : vector<16xf32>
    %15 = vector.multi_reduction <add>, %14, %cst_9 [1] : vector<16x32xf32> to vector<16xf32>
    %16 = vector.shape_cast %15 : vector<16xf32> to vector<16x1xf32>
    %cst_10 = arith.constant 3.200000e+01 : f32
    %17 = vector.broadcast %cst_10 : f32 to vector<16x1xf32>
    %18 = arith.divf %16, %17 : vector<16x1xf32>
    %19 = vector.broadcast %11 : vector<16x1xf32> to vector<16x32xf32>
    %20 = arith.subf %7, %19 : vector<16x32xf32>
    %cst_11 = arith.constant 9.99999974E-6 : f32
    %21 = vector.broadcast %cst_11 : f32 to vector<16x1xf32>
    %22 = arith.addf %18, %21 : vector<16x1xf32>
    %23 = math.rsqrt %22 : vector<16x1xf32>
    %24 = vector.broadcast %23 : vector<16x1xf32> to vector<16x32xf32>
    %25 = arith.mulf %20, %24 : vector<16x32xf32>
    %c0_12 = arith.constant 0 : index
    %c0_13 = arith.constant 0 : index
    %26 = vector.load %arg5[%c0_12, %c0_13] : memref<1x32xf32, #tpu.memory_space<vmem>>, vector<1x32xf32>
    %27 = vector.broadcast %26 : vector<1x32xf32> to vector<16x32xf32>
    %28 = arith.mulf %25, %27 : vector<16x32xf32>
    %c0_14 = arith.constant 0 : index
    %c0_15 = arith.constant 0 : index
    %29 = vector.load %arg6[%c0_14, %c0_15] : memref<1x32xf32, #tpu.memory_space<vmem>>, vector<1x32xf32>
    %30 = vector.broadcast %29 : vector<1x32xf32> to vector<16x32xf32>
    %31 = arith.addf %28, %30 : vector<16x32xf32>
    %c0_16 = arith.constant 0 : index
    %c0_17 = arith.constant 0 : index
    %32 = vector.load %arg7[%c0_16, %c0_17] : memref<16x32xf32, #tpu.memory_space<vmem>>, vector<16x32xf32>
    tpu.vector_store %arg7[%c0_16, %c0_17], %31 {strides = array<i32>} : memref<16x32xf32, #tpu.memory_space<vmem>>, vector<16x32xf32>,
    return
  }
  func.func @transform_0(%arg0: i32) -> (i32, i32) {
    %c0_i32 = arith.constant 0 : i32
    %c0_i32_0 = arith.constant 0 : i32
    return %arg0, %c0_i32 : i32, i32
  }
  func.func @transform_1(%arg0: i32) -> (i32, i32) {
    %c0_i32 = arith.constant 0 : i32
    %c0_i32_0 = arith.constant 0 : i32
    %c0_i32_1 = arith.constant 0 : i32
    return %c0_i32, %c0_i32_0 : i32, i32
  }
  func.func @transform_2(%arg0: i32) -> (i32, i32) {
    %c0_i32 = arith.constant 0 : i32
    %c0_i32_0 = arith.constant 0 : i32
    %c0_i32_1 = arith.constant 0 : i32
    return %c0_i32, %c0_i32_0 : i32, i32
  }
  func.func @transform_3(%arg0: i32) -> (i32, i32) {
    %c0_i32 = arith.constant 0 : i32
    %c0_i32_0 = arith.constant 0 : i32
    return %arg0, %c0_i32 : i32, i32
  }
  func.func @transform_4(%arg0: i32) -> (i32, i32) {
    %c0_i32 = arith.constant 0 : i32
    %c0_i32_0 = arith.constant 0 : i32
    %c0_i32_1 = arith.constant 0 : i32
    return %c0_i32, %c0_i32_0 : i32, i32
  }
  func.func @transform_5(%arg0: i32) -> (i32, i32) {
    %c0_i32 = arith.constant 0 : i32
    %c0_i32_0 = arith.constant 0 : i32
    %c0_i32_1 = arith.constant 0 : i32
    return %c0_i32, %c0_i32_0 : i32, i32
  }
  func.func @transform_6(%arg0: i32) -> (i32, i32) {
    %c0_i32 = arith.constant 0 : i32
    %c0_i32_0 = arith.constant 0 : i32
    return %arg0, %c0_i32 : i32, i32
  }
}

</mosaic_0001>

<llo_original>
// kernel: encoder_layer_forward.7
$region0: #{encoder_layer_forward.7}
  #allocation0 [shape = 'u32[]', space=smem, size = 0x4, offset = 0x4, fixed_abs, tag = 'smem constant byte address 0x4 - core index']
  #allocation1 [shape = 'u32[72,128]{1,0:T(1,128)}', space=vmem, size = 0x9000, scoped, tag = 'internal scratch']
  %s0 = inlined_call_operand.vmem [shape: f32[16,32], index: 0, kind: input, shape index: {}]
  %s1 = inlined_call_operand.vmem [shape: f32[32,64], index: 1, kind: input, shape index: {}]
  %s2 = inlined_call_operand.vmem [shape: f32[1,64], index: 2, kind: input, shape index: {}]
  %s3 = inlined_call_operand.vmem [shape: f32[64,32], index: 3, kind: input, shape index: {}]
  %s4 = inlined_call_operand.vmem [shape: f32[1,32], index: 4, kind: input, shape index: {}]
  %s5 = inlined_call_operand.vmem [shape: f32[1,32], index: 5, kind: input, shape index: {}]
  %s6 = inlined_call_operand.vmem [shape: f32[1,32], index: 6, kind: input, shape index: {}]
  %s7 = inlined_call_operand.hbm [shape: f32[16,32], index: 7, kind: output, shape index: {}]
  %s8 = sld [smem:[#allocation0]]
  $region38: #{encoder_layer_forward.7} parent=0
    _
  %s10 = ssub.s32 1, %s8
  %s11 = scalar_select 0, %s10, %s8
  $region1: #{encoder_layer_forward.7} parent=0
    #allocation2 [shape = 'u8[8192]{0}', space=vmem, size = 0x2000, scoped, tag = 'output window, operand 0, single buffered']
    #allocation3 [shape = 's32[1]{0}', space=sflag, size = 0x4, scoped, tag = 'scoped memory for encoder_layer_forward.7']
    %12 = vsyncpa [#allocation3], 0
    // Predicated region
    $region2: #{encoder_layer_forward.7} parent=1 // pred_check
      _
    $region3: #{encoder_layer_forward.7} parent=1 // pred_check_branch
      %14 = sbr.rel (0) target = $region5
    $region4: #{encoder_layer_forward.7} parent=1 // pred_region
      _
    $region5: #{encoder_layer_forward.7} parent=1 // pred_fallthru
      _
    // Predicated region
    $region6: #{encoder_layer_forward.7} parent=1 // pred_check
      _
    $region7: #{encoder_layer_forward.7} parent=1 // pred_check_branch
      %16 = sbr.rel (0) target = $region9
    $region8: #{encoder_layer_forward.7} parent=1 // pred_region
      _
    $region9: #{encoder_layer_forward.7} parent=1 // pred_fallthru
      _
    // Predicated region
    $region10: #{encoder_layer_forward.7} parent=1 // pred_check
      _
    $region11: #{encoder_layer_forward.7} parent=1 // pred_check_branch
      %18 = sbr.rel (0) target = $region13
    $region12: #{encoder_layer_forward.7} parent=1 // pred_region
      _
    $region13: #{encoder_layer_forward.7} parent=1 // pred_fallthru
      _
    // Predicated region
    $region14: #{encoder_layer_forward.7} parent=1 // pred_check
      _
    $region15: #{encoder_layer_forward.7} parent=1 // pred_check_branch
      %20 = sbr.rel (0) target = $region17
    $region16: #{encoder_layer_forward.7} parent=1 // pred_region
      _
    $region17: #{encoder_layer_forward.7} parent=1 // pred_fallthru
      _
    // Predicated region
    $region18: #{encoder_layer_forward.7} parent=1 // pred_check
      _
    $region19: #{encoder_layer_forward.7} parent=1 // pred_check_branch
      %22 = sbr.rel (0) target = $region21
    $region20: #{encoder_layer_forward.7} parent=1 // pred_region
      _
    $region21: #{encoder_layer_forward.7} parent=1 // pred_fallthru
      _
    // Predicated region
    $region22: #{encoder_layer_forward.7} parent=1 // pred_check
      _
    $region23: #{encoder_layer_forward.7} parent=1 // pred_check_branch
      %24 = sbr.rel (0) target = $region25
    $region24: #{encoder_layer_forward.7} parent=1 // pred_region
      _
    $region25: #{encoder_layer_forward.7} parent=1 // pred_fallthru
      _
    // Predicated region
    $region26: #{encoder_layer_forward.7} parent=1 // pred_check
      _
    $region27: #{encoder_layer_forward.7} parent=1 // pred_check_branch
      %26 = sbr.rel (0) target = $region29
    $region28: #{encoder_layer_forward.7} parent=1 // pred_region
      _
    $region29: #{encoder_layer_forward.7} parent=1 // pred_fallthru
      _
    %v27 = vld [vmem:[%s0] sm:$0xff]
    %v28 = vld [vmem:[%s0 + $0x8] sm:$0xff]
    %v29 = vld [vmem:[%s1] sm:$0xff]
    %v30 = vld [vmem:[%s1 + $0x8] sm:$0xff]
    %v31 = vld [vmem:[%s1 + $0x10] sm:$0xff]
    %v32 = vld [vmem:[%s1 + $0x18] sm:$0xff]
    %v33 = vld [vmem:[%s2] sm:$0x1]
    %v35 = vperm.slane %v33, 0
    %vm37 = vcmask 261120
    %v39 = vsel %vm37, %v27, 0
    %v42 = vsel %vm37, %v28, 0
    %44 = vmatpush.msra.mxu0 0.0
    %45 = vmatpush.msra.mxu0 0.0
    %46 = vmatpush.msra.mxu0 0.0
    %47 = vmatpush.msra.mxu0 0.0
    %48 = vmatpush.msra.mxu0 0.0
    %49 = vmatpush.msra.mxu0 0.0
    %50 = vmatpush.msra.mxu0 0.0
    %51 = vmatpush.msra.mxu0 0.0
    %52 = vmatpush.msra.mxu0 0.0
    %53 = vmatpush.msra.mxu0 0.0
    %54 = vmatpush.msra.mxu0 0.0
    %55 = vmatpush.msra.mxu0 0.0
    %56 = vmatpush.msra.mxu0 %v32
    %57 = vmatpush.msra.mxu0 %v31
    %58 = vmatpush.msra.mxu0 %v30
    %59 = vmatpush.msra.mxu0 %v29
    %60 = vmatmul.f32.gmra.mxu0 %v39
    %v61 = vpop.f32.mrf.mxu0
    %v62 = vadd.f32 %v35, %v61
    %63 = vmatmul.f32.gmra.mxu0 %v42
    %v64 = vpop.f32.mrf.mxu0
    %v65 = vadd.f32 %v35, %v64
    %66 = vdwg.mxu0
    %v67 = vmax.f32 %v62, 0.0
    %v68 = vmax.f32 %v65, 0.0
    %v69 = vld [vmem:[%s3] sm:$0xff]
    %v70 = vld [vmem:[%s3 + $0x8] sm:$0xff]
    %v71 = vld [vmem:[%s3 + $0x10] sm:$0xff]
    %v72 = vld [vmem:[%s3 + $0x18] sm:$0xff]
    %v73 = vld [vmem:[%s3 + $0x20] sm:$0xff]
    %v74 = vld [vmem:[%s3 + $0x28] sm:$0xff]
    %v75 = vld [vmem:[%s3 + $0x30] sm:$0xff]
    %v76 = vld [vmem:[%s3 + $0x38] sm:$0xff]
    %v77 = vld [vmem:[%s4] sm:$0x1]
    %v79 = vperm.slane %v77, 0
    %vm81 = vcmask 523264
    %v83 = vsel %vm81, %v67, 0
    %v86 = vsel %vm81, %v68, 0
    %88 = vmatpush.msra.mxu0 0.0
    %89 = vmatpush.msra.mxu0 0.0
    %90 = vmatpush.msra.mxu0 0.0
    %91 = vmatpush.msra.mxu0 0.0
    %92 = vmatpush.msra.mxu0 0.0
    %93 = vmatpush.msra.mxu0 0.0
    %94 = vmatpush.msra.mxu0 0.0
    %95 = vmatpush.msra.mxu0 0.0
    %96 = vmatpush.msra.mxu0 %v76
    %97 = vmatpush.msra.mxu0 %v75
    %98 = vmatpush.msra.mxu0 %v74
    %99 = vmatpush.msra.mxu0 %v73
    %100 = vmatpush.msra.mxu0 %v72
    %101 = vmatpush.msra.mxu0 %v71
    %102 = vmatpush.msra.mxu0 %v70
    %103 = vmatpush.msra.mxu0 %v69
    %104 = vmatmul.f32.gmra.mxu0 %v83
    %v105 = vpop.f32.mrf.mxu0
    %v106 = vadd.f32 %v79, %v105
    %107 = vmatmul.f32.gmra.mxu0 %v86
    %v108 = vpop.f32.mrf.mxu0
    %v109 = vadd.f32 %v79, %v108
    %110 = vdwg.mxu0
    %v111 = vadd.f32 %v27, %v106
    %v112 = vadd.f32 %v28, %v109
    %v113 = vsel %vm37, %v111, 0.0
    %114 = vadd.xlane.f32.xlu0 %v113
    %v115 = vpop.xlane.xlu0 %114
    %v116 = vsel %vm37, %v112, 0.0
    %117 = vadd.xlane.f32.xlu0 %v116
    %v118 = vpop.xlane.xlu0 %117
    %v119 = vrcp.pop 32.0
    %v120 = vmul.f32 32.0, %v119
    %v121 = vsub.f32 1.0, %v120
    %v122 = vmul.f32 %v119, %v121
    %v123 = vadd.f32 %v119, %v122
    %vm124 = vweird.f32 %v119
    %v125 = vsel %vm124, %v119, %v123
    %v126 = vmul.f32 %v115, %v125
    %v127 = vmul.f32 %v118, %v125
    %v128 = vsub.f32 %v111, %v126
    %v129 = vsub.f32 %v112, %v127
    %v130 = vmul.f32 %v128, %v128
    %v131 = vmul.f32 %v129, %v129
    %v132 = vsel %vm37, %v130, 0.0
    %133 = vadd.xlane.f32.xlu0 %v132
    %v134 = vpop.xlane.xlu0 %133
    %v135 = vsel %vm37, %v131, 0.0
    %136 = vadd.xlane.f32.xlu0 %v135
    %v137 = vpop.xlane.xlu0 %136
    %v138 = vmul.f32 %v134, %v125
    %v139 = vmul.f32 %v137, %v125
    %v140 = vadd.f32 %v138, 1e-05
    %v141 = vadd.f32 %v139, 1e-05
    %v142 = vrsqrt.pop %v140
    %v143 = vmul.f32 %v142, %v140
    %v144 = vmul.f32 %v143, %v142
    %v145 = vmul.f32 0.5, %v144
    %v146 = vsub.f32 1.5, %v145
    %v147 = vmul.f32 %v142, %v146
    %vm148 = vweird.f32 %v140
    %vm149 = vweird.f32 %v142
    %vm150 = vmor %vm148, %vm149
    %v151 = vsel %vm150, %v142, %v147
    %v152 = vrsqrt.pop %v141
    %v153 = vmul.f32 %v152, %v141
    %v154 = vmul.f32 %v153, %v152
    %v155 = vmul.f32 0.5, %v154
    %v156 = vsub.f32 1.5, %v155
    %v157 = vmul.f32 %v152, %v156
    %vm158 = vweird.f32 %v141
    %vm159 = vweird.f32 %v152
    %vm160 = vmor %vm158, %vm159
    %v161 = vsel %vm160, %v152, %v157
    %v162 = vmul.f32 %v128, %v151
    %v163 = vmul.f32 %v129, %v161
    %v164 = vld [vmem:[%s5] sm:$0x1]
    %v166 = vperm.slane %v164, 0
    %v168 = vmul.f32 %v162, %v166
    %v169 = vmul.f32 %v163, %v166
    %v170 = vld [vmem:[%s6] sm:$0x1]
    %v172 = vperm.slane %v170, 0
    %v174 = vadd.f32 %v168, %v172
    %v175 = vadd.f32 %v169, %v172
    %176 = vst.msk [vmem:[#allocation2] sm:$0xff] %vm37, %v174
    %177 = vst.msk [vmem:[#allocation2 + $0x8] sm:$0xff] %vm37, %v175
    // Predicated region
    $region30: #{encoder_layer_forward.7} parent=1 // pred_check
      _
    $region31: #{encoder_layer_forward.7} parent=1 // pred_check_branch
      %179 = sbr.rel (0) target = $region33
    $region32: #{encoder_layer_forward.7} parent=1 // pred_region
      %181 = vsyncadd [#allocation3], 0
      %s182 = sshll.u32 [#allocation2], 4
      %s183 = int_to_ptr.vmem [resolvable:$true] %s182
      %s184 = sshll.u32 %s7, 4
      %s185 = int_to_ptr.hbm [resolvable:$true] %s184
      %190 = dma.vmem_to_hbm [thread:$0]  %s183, 256, %s185, [#allocation3], 128, 128, 8
    $region33: #{encoder_layer_forward.7} parent=1 // pred_fallthru
      _
    // Predicated region
    $region34: #{encoder_layer_forward.7} parent=1 // pred_check
      _
    $region35: #{encoder_layer_forward.7} parent=1 // pred_check_branch
      %192 = sbr.rel (0) target = $region37
    $region36: #{encoder_layer_forward.7} parent=1 // pred_region
      %194 = dma.done [#allocation3], 256
    $region37: #{encoder_layer_forward.7} parent=1 // pred_fallthru
      _
    %195 = vsyncpa [#allocation3], 1

// kernel: encoder_layer_forward.5
$region0: #{encoder_layer_forward.5}
  #allocation0 [shape = 'u32[]', space=smem, size = 0x4, offset = 0x4, fixed_abs, tag = 'smem constant byte address 0x4 - core index']
  #allocation1 [shape = 'u32[72,128]{1,0:T(1,128)}', space=vmem, size = 0x9000, scoped, tag = 'internal scratch']
  %s0 = inlined_call_operand.vmem [shape: f32[8,8,8], index: 0, kind: input, shape index: {}]
  %s1 = inlined_call_operand.vmem [shape: f32[8,8,8], index: 1, kind: input, shape index: {}]
  %s2 = inlined_call_operand.vmem [shape: f32[8,8,8], index: 2, kind: input, shape index: {}]
  %s3 = inlined_call_operand.vmem [shape: f32[8,8,8], index: 3, kind: output, shape index: {0}]
  %s4 = inlined_call_operand.hbm [shape: f32[8,8,8], index: 4, kind: output, shape index: {1}]
  %5 = xla_tuple %s3, %s4
  %s6 = sld [smem:[#allocation0]]
  $region53: #{encoder_layer_forward.5} parent=0
    _
  %s8 = ssub.s32 1, %s6
  %s9 = scalar_select 0, %s8, %s6
  $region1: #{encoder_layer_forward.5} parent=0
    #allocation2 [shape = 'u8[32768]{0}', space=vmem, size = 0x8000, scoped, tag = 'output window, operand 1']
    #allocation3 [shape = 's32[2]{0}', space=sflag, size = 0x8, scoped, tag = 'scoped memory for encoder_layer_forward.5']
    %10 = vsyncpa [#allocation3], 0
    %s11 = scalar_lea.sflag [#allocation3], 1
    %12 = vsyncpa %s11, 0
    loop: start=0, step=1, limit=4
    $region2: #{encoder_layer_forward.5} parent=1 // loop_pre_header
      _
    $region3: #{encoder_layer_forward.5} parent=1 // loop_header
      %s14 = sphi 0, %s18
      %p15 = scmp.ge.s32.totalorder %s14, 4
      %s24 = sphi 0, %s26
      %s27 = sphi 0, %s24
      %s28 = sphi 0, %s27
      %s44 = sphi 0, %s28
      %s50 = sphi 0, %s52
      %s53 = sphi 0, %s50
      %s54 = sphi 0, %s53
      %s70 = sphi 0, %s54
      %s76 = sphi 0, %s78
      %s79 = sphi 0, %s76
      %s80 = sphi 0, %s79
      %s96 = sphi 0, %s80
      %s102 = sphi 0, %s104
      %s105 = sphi 0, %s102
      %s106 = sphi 0, %s105
      %s122 = sphi 0, %s106
      %s128 = sphi 0, %s130
      %s131 = sphi 0, %s128
      %s132 = sphi 0, %s131
      %s148 = sphi 0, %s132
    $region4: #{encoder_layer_forward.5} parent=1 // loop_header_branch
      %17 = sbr.rel (%p15) target = $region8
    $region5: #{encoder_layer_forward.5} parent=1 // loop_body
      %s19 = ssub.s32 %s14, 1
      %s20 = ssub.s32 %s14, 2
      %s21 = sadd.s32 %s14, 1
      %s22 = ssub.s32 %s14, %s21
      %p23 = scmp.eq.s32.totalorder %s22, 0
      %s25 = sadd.s32 %s24, 1
      %s26 = scalar_select %p23, %s24, %s25
      %p29 = pneg %p23
      %p30 = scmp.eq.s32.totalorder %s14, 1
      %p31 = por %p29, %p30
      %p32 = scmp.ne.s32.totalorder %s24, %s27
      %p33 = scmp.eq.s32.totalorder %s14, 0
      %p34 = por %p32, %p33
      %p35 = scmp.ne.s32.totalorder %s24, %s27
      %p36 = scmp.eq.s32.totalorder %s19, 1
      %p37 = por %p35, %p36
      %p38 = scmp.ne.s32.totalorder %s27, %s28
      %p39 = scmp.eq.s32.totalorder %s19, 0
      %p40 = por %p38, %p39
      %p41 = scmp.ne.s32.totalorder %s27, %s28
      %p42 = scmp.eq.s32.totalorder %s20, 1
      %p43 = por %p41, %p42
      %p45 = scmp.ne.s32.totalorder %s28, %s44
      %p46 = scmp.eq.s32.totalorder %s20, 0
      %p47 = por %p45, %p46
      %s48 = ssub.s32 %s14, %s21
      %p49 = scmp.eq.s32.totalorder %s48, 0
      %s51 = sadd.s32 %s50, 1
      %s52 = scalar_select %p49, %s50, %s51
      %p55 = pneg %p49
      %p56 = scmp.eq.s32.totalorder %s14, 1
      %p57 = por %p55, %p56
      %p58 = scmp.ne.s32.totalorder %s50, %s53
      %p59 = scmp.eq.s32.totalorder %s14, 0
      %p60 = por %p58, %p59
      %p61 = scmp.ne.s32.totalorder %s50, %s53
      %p62 = scmp.eq.s32.totalorder %s19, 1
      %p63 = por %p61, %p62
      %p64 = scmp.ne.s32.totalorder %s53, %s54
      %p65 = scmp.eq.s32.totalorder %s19, 0
      %p66 = por %p64, %p65
      %p67 = scmp.ne.s32.totalorder %s53, %s54
      %p68 = scmp.eq.s32.totalorder %s20, 1
      %p69 = por %p67, %p68
      %p71 = scmp.ne.s32.totalorder %s54, %s70
      %p72 = scmp.eq.s32.totalorder %s20, 0
      %p73 = por %p71, %p72
      %s74 = ssub.s32 %s14, %s21
      %p75 = scmp.eq.s32.totalorder %s74, 0
      %s77 = sadd.s32 %s76, 1
      %s78 = scalar_select %p75, %s76, %s77
      %p81 = pneg %p75
      %p82 = scmp.eq.s32.totalorder %s14, 1
      %p83 = por %p81, %p82
      %p84 = scmp.ne.s32.totalorder %s76, %s79
      %p85 = scmp.eq.s32.totalorder %s14, 0
      %p86 = por %p84, %p85
      %p87 = scmp.ne.s32.totalorder %s76, %s79
      %p88 = scmp.eq.s32.totalorder %s19, 1
      %p89 = por %p87, %p88
      %p90 = scmp.ne.s32.totalorder %s79, %s80
      %p91 = scmp.eq.s32.totalorder %s19, 0
      %p92 = por %p90, %p91
      %p93 = scmp.ne.s32.totalorder %s79, %s80
      %p94 = scmp.eq.s32.totalorder %s20, 1
      %p95 = por %p93, %p94
      %p97 = scmp.ne.s32.totalorder %s80, %s96
      %p98 = scmp.eq.s32.totalorder %s20, 0
      %p99 = por %p97, %p98
      %s100 = ssub.s32 %s14, %s21
      %p101 = scmp.eq.s32.totalorder %s100, 0
      %s103 = sadd.s32 %s102, 1
      %s104 = scalar_select %p101, %s102, %s103
      %p107 = pneg %p101
      %p108 = scmp.eq.s32.totalorder %s14, 1
      %p109 = por %p107, %p108
      %p110 = scmp.ne.s32.totalorder %s102, %s105
      %p111 = scmp.eq.s32.totalorder %s14, 0
      %p112 = por %p110, %p111
      %p113 = scmp.ne.s32.totalorder %s102, %s105
      %p114 = scmp.eq.s32.totalorder %s19, 1
      %p115 = por %p113, %p114
      %p116 = scmp.ne.s32.totalorder %s105, %s106
      %p117 = scmp.eq.s32.totalorder %s19, 0
      %p118 = por %p116, %p117
      %p119 = scmp.ne.s32.totalorder %s105, %s106
      %p120 = scmp.eq.s32.totalorder %s20, 1
      %p121 = por %p119, %p120
      %p123 = scmp.ne.s32.totalorder %s106, %s122
      %p124 = scmp.eq.s32.totalorder %s20, 0
      %p125 = por %p123, %p124
      %s126 = ssub.s32 %s14, %s21
      %p127 = scmp.eq.s32.totalorder %s126, 0
      %s129 = sadd.s32 %s128, 1
      %s130 = scalar_select %p127, %s128, %s129
      %p133 = pneg %p127
      %p134 = scmp.eq.s32.totalorder %s14, 1
      %p135 = por %p133, %p134
      %p136 = scmp.ne.s32.totalorder %s128, %s131
      %p137 = scmp.eq.s32.totalorder %s14, 0
      %p138 = por %p136, %p137
      %p139 = scmp.ne.s32.totalorder %s128, %s131
      %p140 = scmp.eq.s32.totalorder %s19, 1
      %p141 = por %p139, %p140
      %p142 = scmp.ne.s32.totalorder %s131, %s132
      %p143 = scmp.eq.s32.totalorder %s19, 0
      %p144 = por %p142, %p143
      %p145 = scmp.ne.s32.totalorder %s131, %s132
      %p146 = scmp.eq.s32.totalorder %s20, 1
      %p147 = por %p145, %p146
      %p149 = scmp.ne.s32.totalorder %s132, %s148
      %p150 = scmp.eq.s32.totalorder %s20, 0
      %p151 = por %p149, %p150
      %p152 = scmp.le.s32.totalorder 1, %s14
      %p153 = scmp.lt.s32.totalorder %s14, 3
      %p154 = pnand %p152, %p153
      %p155 = pneg %p154
      // Predicated region
      $region9: #{encoder_layer_forward.5} parent=5 // pred_check
        _
      $region10: #{encoder_layer_forward.5} parent=5 // pred_check_branch
        %157 = sbr.rel (%p154) target = $region12
      $region11: #{encoder_layer_forward.5} parent=5 // pred_region
        %s158 = ssub.s32 %s14, 1
      $region12: #{encoder_layer_forward.5} parent=5 // pred_fallthru
        _
      %p159 = scmp.lt.s32.totalorder %s14, 2
      // Predicated region
      $region13: #{encoder_layer_forward.5} parent=5 // pred_check
        %p160 = pneg %p159
      $region14: #{encoder_layer_forward.5} parent=5 // pred_check_branch
        %162 = sbr.rel (%p160) target = $region16
      $region15: #{encoder_layer_forward.5} parent=5 // pred_region
        // Predicated region
        $region17: #{encoder_layer_forward.5} parent=15 // pred_check
          %p163 = pneg %p34
        $region18: #{encoder_layer_forward.5} parent=15 // pred_check_branch
          %165 = sbr.rel (%p163) target = $region20
        $region19: #{encoder_layer_forward.5} parent=15 // pred_region
          %s166 = smul.u32 4, %s14
          %p167 = scmp.lt.s32.totalorder %s166, 7
          %s168 = scalar_select %p167, %s166, 7
          %s169 = smul.addr %s168, 8
          %s170 = scalar_lea.vmem %s0, %s169
          %s171 = smul.u32 4, %s14
        $region20: #{encoder_layer_forward.5} parent=15 // pred_fallthru
          _
        // Predicated region
        $region21: #{encoder_layer_forward.5} parent=15 // pred_check
          %p172 = pneg %p60
        $region22: #{encoder_layer_forward.5} parent=15 // pred_check_branch
          %174 = sbr.rel (%p172) target = $region24
        $region23: #{encoder_layer_forward.5} parent=15 // pred_region
          %s175 = smul.u32 4, %s14
          %p176 = scmp.lt.s32.totalorder %s175, 7
          %s177 = scalar_select %p176, %s175, 7
          %s178 = smul.addr %s177, 8
          %s179 = scalar_lea.vmem %s1, %s178
          %s180 = smul.u32 4, %s14
        $region24: #{encoder_layer_forward.5} parent=15 // pred_fallthru
          _
        // Predicated region
        $region25: #{encoder_layer_forward.5} parent=15 // pred_check
          %p181 = pneg %p86
        $region26: #{encoder_layer_forward.5} parent=15 // pred_check_branch
          %183 = sbr.rel (%p181) target = $region28
        $region27: #{encoder_layer_forward.5} parent=15 // pred_region
          %s184 = smul.u32 4, %s14
          %p185 = scmp.lt.s32.totalorder %s184, 7
          %s186 = scalar_select %p185, %s184, 7
          %s187 = smul.addr %s186, 8
          %s188 = scalar_lea.vmem %s2, %s187
          %s189 = smul.u32 4, %s14
        $region28: #{encoder_layer_forward.5} parent=15 // pred_fallthru
          _
      $region16: #{encoder_layer_forward.5} parent=5 // pred_fallthru
        _
      %p190 = scmp.le.s32.totalorder 1, %s14
      %p191 = scmp.lt.s32.totalorder %s14, 3
      %p192 = pnand %p190, %p191
      %p193 = pneg %p192
      // Predicated region
      $region29: #{encoder_layer_forward.5} parent=5 // pred_check
        _
      $region30: #{encoder_layer_forward.5} parent=5 // pred_check_branch
        %195 = sbr.rel (%p192) target = $region32
      $region31: #{encoder_layer_forward.5} parent=5 // pred_region
        %s196 = ssub.s32 %s14, 1
        %s197 = smul.u32 4, %s19
        %p198 = scmp.lt.s32.totalorder %s197, 7
        %s199 = scalar_select %p198, %s197, 7
        %s200 = smul.addr %s199, 8
        %s201 = scalar_lea.vmem %s0, %s200
        %p202 = pneg %p40
        %p203 = pneg %p37
        %s204 = smul.u32 4, %s19
        %p205 = scmp.lt.s32.totalorder %s204, 7
        %s206 = scalar_select %p205, %s204, 7
        %s207 = smul.addr %s206, 8
        %s208 = scalar_lea.vmem %s1, %s207
        %p209 = pneg %p66
        %p210 = pneg %p63
        %s211 = smul.u32 4, %s19
        %p212 = scmp.lt.s32.totalorder %s211, 7
        %s213 = scalar_select %p212, %s211, 7
        %s214 = smul.addr %s213, 8
        %s215 = scalar_lea.vmem %s2, %s214
        %p216 = pneg %p92
        %p217 = pneg %p89
        %p218 = pneg %p118
        %p219 = pneg %p115
        %s220 = smul.u32 4, %s19
        %p221 = scmp.lt.s32.totalorder %s220, 7
        %s222 = scalar_select %p221, %s220, 7
        %s223 = smul.addr %s222, 8
        %s224 = scalar_lea.vmem %s3, %s223
        %p225 = pneg %p144
        %p226 = pneg %p141
        %s227 = sand.u32 %s131, 1
        %s228 = scalar_lea.sflag [#allocation3], %s227
        %s229 = sand.u32 %s131, 1
        %s230 = smul.addr %s229, 32
        %s231 = scalar_lea.vmem [#allocation2], %s230
        %s232 = smul.u32 4, %s19
        %p233 = scmp.lt.s32.totalorder %s232, 7
        %s234 = scalar_select %p233, %s232, 7
        %s235 = smul.addr %s234, 8
        %s236 = scalar_lea.vmem %s0, %s235
        %s237 = smul.u32 4, %s19
        %s238 = smul.u32 4, %s19
        %p239 = scmp.lt.s32.totalorder %s238, 7
        %s240 = scalar_select %p239, %s238, 7
        %s241 = smul.addr %s240, 8
        %s242 = scalar_lea.vmem %s1, %s241
        %s243 = smul.u32 4, %s19
        %s244 = smul.u32 4, %s19
        %p245 = scmp.lt.s32.totalorder %s244, 7
        %s246 = scalar_select %p245, %s244, 7
        %s247 = smul.addr %s246, 8
        %s248 = scalar_lea.vmem %s2, %s247
        %s249 = smul.u32 4, %s19
        %s250 = smul.u32 4, %s19
        %p251 = scmp.lt.s32.totalorder %s250, 7
        %s252 = scalar_select %p251, %s250, 7
        %s253 = smul.addr %s252, 8
        %s254 = scalar_lea.vmem %s3, %s253
        %s255 = smul.u32 4, %s19
        %s256 = smul.u32 4, %s19
        %v257 = vld [vmem:[%s236] sm:$0xff]
        %v258 = vld [vmem:[%s236 + $0x8] sm:$0xff]
        %v259 = vld [vmem:[%s236 + $0x10] sm:$0xff]
        %v260 = vld [vmem:[%s236 + $0x18] sm:$0xff]
        %v261 = vld [vmem:[%s242] sm:$0xff]
        %v262 = vld [vmem:[%s242 + $0x8] sm:$0xff]
        %v263 = vld [vmem:[%s242 + $0x10] sm:$0xff]
        %v264 = vld [vmem:[%s242 + $0x18] sm:$0xff]
        %v265 = vld [vmem:[%s248] sm:$0xff]
        %v266 = vld [vmem:[%s248 + $0x8] sm:$0xff]
        %v267 = vld [vmem:[%s248 + $0x10] sm:$0xff]
        %v268 = vld [vmem:[%s248 + $0x18] sm:$0xff]
        %vm269 = vcmask 64512
        %v271 = vsel %vm269, %v257, 0
        %v274 = vsel %vm269, %v261, 0
        %276 = vmatpush.xpose.msra.mxu0 0.0
        %277 = vmatpush.xpose.msra.mxu0 0.0
        %278 = vmatpush.xpose.msra.mxu0 0.0
        %279 = vmatpush.xpose.msra.mxu0 0.0
        %280 = vmatpush.xpose.msra.mxu0 0.0
        %281 = vmatpush.xpose.msra.mxu0 0.0
        %282 = vmatpush.xpose.msra.mxu0 0.0
        %283 = vmatpush.xpose.msra.mxu0 0.0
        %284 = vmatpush.xpose.msra.mxu0 0.0
        %285 = vmatpush.xpose.msra.mxu0 0.0
        %286 = vmatpush.xpose.msra.mxu0 0.0
        %287 = vmatpush.xpose.msra.mxu0 0.0
        %288 = vmatpush.xpose.msra.mxu0 0.0
        %289 = vmatpush.xpose.msra.mxu0 0.0
        %290 = vmatpush.xpose.msra.mxu0 0.0
        %291 = vmatpush.xpose.msra.mxu0 %v274
        %292 = vmatmul.f32.gmra.mxu0 %v271
        %v293 = vpop.f32.mrf.mxu0
        %v294 = vadd.f32 0.0, %v293
        %295 = vdwg.mxu0
        %v297 = vsel %vm269, %v258, 0
        %v300 = vsel %vm269, %v262, 0
        %302 = vmatpush.xpose.msra.mxu0 0.0
        %303 = vmatpush.xpose.msra.mxu0 0.0
        %304 = vmatpush.xpose.msra.mxu0 0.0
        %305 = vmatpush.xpose.msra.mxu0 0.0
        %306 = vmatpush.xpose.msra.mxu0 0.0
        %307 = vmatpush.xpose.msra.mxu0 0.0
        %308 = vmatpush.xpose.msra.mxu0 0.0
        %309 = vmatpush.xpose.msra.mxu0 0.0
        %310 = vmatpush.xpose.msra.mxu0 0.0
        %311 = vmatpush.xpose.msra.mxu0 0.0
        %312 = vmatpush.xpose.msra.mxu0 0.0
        %313 = vmatpush.xpose.msra.mxu0 0.0
        %314 = vmatpush.xpose.msra.mxu0 0.0
        %315 = vmatpush.xpose.msra.mxu0 0.0
        %316 = vmatpush.xpose.msra.mxu0 0.0
        %317 = vmatpush.xpose.msra.mxu0 %v300
        %318 = vmatmul.f32.gmra.mxu0 %v297
        %v319 = vpop.f32.mrf.mxu0
        %v320 = vadd.f32 0.0, %v319
        %321 = vdwg.mxu0
        %v323 = vsel %vm269, %v259, 0
        %v326 = vsel %vm269, %v263, 0
        %328 = vmatpush.xpose.msra.mxu0 0.0
        %329 = vmatpush.xpose.msra.mxu0 0.0
        %330 = vmatpush.xpose.msra.mxu0 0.0
        %331 = vmatpush.xpose.msra.mxu0 0.0
        %332 = vmatpush.xpose.msra.mxu0 0.0
        %333 = vmatpush.xpose.msra.mxu0 0.0
        %334 = vmatpush.xpose.msra.mxu0 0.0
        %335 = vmatpush.xpose.msra.mxu0 0.0
        %336 = vmatpush.xpose.msra.mxu0 0.0
        %337 = vmatpush.xpose.msra.mxu0 0.0
        %338 = vmatpush.xpose.msra.mxu0 0.0
        %339 = vmatpush.xpose.msra.mxu0 0.0
        %340 = vmatpush.xpose.msra.mxu0 0.0
        %341 = vmatpush.xpose.msra.mxu0 0.0
        %342 = vmatpush.xpose.msra.mxu0 0.0
        %343 = vmatpush.xpose.msra.mxu0 %v326
        %344 = vmatmul.f32.gmra.mxu0 %v323
        %v345 = vpop.f32.mrf.mxu0
        %v346 = vadd.f32 0.0, %v345
        %347 = vdwg.mxu0
        %v349 = vsel %vm269, %v260, 0
        %v352 = vsel %vm269, %v264, 0
        %354 = vmatpush.xpose.msra.mxu0 0.0
        %355 = vmatpush.xpose.msra.mxu0 0.0
        %356 = vmatpush.xpose.msra.mxu0 0.0
        %357 = vmatpush.xpose.msra.mxu0 0.0
        %358 = vmatpush.xpose.msra.mxu0 0.0
        %359 = vmatpush.xpose.msra.mxu0 0.0
        %360 = vmatpush.xpose.msra.mxu0 0.0
        %361 = vmatpush.xpose.msra.mxu0 0.0
        %362 = vmatpush.xpose.msra.mxu0 0.0
        %363 = vmatpush.xpose.msra.mxu0 0.0
        %364 = vmatpush.xpose.msra.mxu0 0.0
        %365 = vmatpush.xpose.msra.mxu0 0.0
        %366 = vmatpush.xpose.msra.mxu0 0.0
        %367 = vmatpush.xpose.msra.mxu0 0.0
        %368 = vmatpush.xpose.msra.mxu0 0.0
        %369 = vmatpush.xpose.msra.mxu0 %v352
        %370 = vmatmul.f32.gmra.mxu0 %v349
        %v371 = vpop.f32.mrf.mxu0
        %v372 = vadd.f32 0.0, %v371
        %373 = vdwg.mxu0
        %v374 = vmul.f32 %v294, 0.70710677
        %v375 = vmul.f32 %v320, 0.70710677
        %v376 = vmul.f32 %v346, 0.70710677
        %v377 = vmul.f32 %v372, 0.70710677
        %v378 = vsel %vm269, %v374, -inf
        %379 = vmax.xlane.f32.xlu0 %v378
        %v380 = vpop.xlane.xlu0 %379
        %v381 = vsel %vm269, %v375, -inf
        %382 = vmax.xlane.f32.xlu0 %v381
        %v383 = vpop.xlane.xlu0 %382
        %v384 = vsel %vm269, %v376, -inf
        %385 = vmax.xlane.f32.xlu0 %v384
        %v386 = vpop.xlane.xlu0 %385
        %v387 = vsel %vm269, %v377, -inf
        %388 = vmax.xlane.f32.xlu0 %v387
        %v389 = vpop.xlane.xlu0 %388
        %v390 = vsub.f32 %v374, %v380
        %v391 = vsub.f32 %v375, %v383
        %v392 = vsub.f32 %v376, %v386
        %v393 = vsub.f32 %v377, %v389
        %v394 = vmul.f32 %v390, 1.442695
        %v395 = vpow.pop %v394
        %v396 = vmul.f32 %v391, 1.442695
        %v397 = vpow.pop %v396
        %v398 = vmul.f32 %v392, 1.442695
        %v399 = vpow.pop %v398
        %v400 = vmul.f32 %v393, 1.442695
        %v401 = vpow.pop %v400
        %v402 = vsel %vm269, %v395, 0.0
        %403 = vadd.xlane.f32.xlu0 %v402
        %v404 = vpop.xlane.xlu0 %403
        %v405 = vsel %vm269, %v397, 0.0
        %406 = vadd.xlane.f32.xlu0 %v405
        %v407 = vpop.xlane.xlu0 %406
        %v408 = vsel %vm269, %v399, 0.0
        %409 = vadd.xlane.f32.xlu0 %v408
        %v410 = vpop.xlane.xlu0 %409
        %v411 = vsel %vm269, %v401, 0.0
        %412 = vadd.xlane.f32.xlu0 %v411
        %v413 = vpop.xlane.xlu0 %412
        %v414 = vrcp.pop %v404
        %v415 = vrcp.pop %v407
        %v416 = vrcp.pop %v410
        %v417 = vrcp.pop %v413
        %v418 = vmul.f32 %v404, %v414
        %v419 = vmul.f32 %v407, %v415
        %v420 = vmul.f32 %v410, %v416
        %v421 = vmul.f32 %v413, %v417
        %v422 = vsub.f32 2.0, %v418
        %v423 = vsub.f32 2.0, %v419
        %v424 = vsub.f32 2.0, %v420
        %v425 = vsub.f32 2.0, %v421
        %v426 = vmul.f32 %v414, %v422
        %v427 = vmul.f32 %v415, %v423
        %v428 = vmul.f32 %v416, %v424
        %v429 = vmul.f32 %v417, %v425
        %v430 = vmul.f32 %v395, %v426
        %v431 = vmul.f32 %v397, %v427
        %v432 = vmul.f32 %v399, %v428
        %v433 = vmul.f32 %v401, %v429
        %v435 = vsel %vm269, %v430, 0
        %437 = vmatpush.msra.mxu0 0.0
        %438 = vmatpush.msra.mxu0 0.0
        %439 = vmatpush.msra.mxu0 0.0
        %440 = vmatpush.msra.mxu0 0.0
        %441 = vmatpush.msra.mxu0 0.0
        %442 = vmatpush.msra.mxu0 0.0
        %443 = vmatpush.msra.mxu0 0.0
        %444 = vmatpush.msra.mxu0 0.0
        %445 = vmatpush.msra.mxu0 0.0
        %446 = vmatpush.msra.mxu0 0.0
        %447 = vmatpush.msra.mxu0 0.0
        %448 = vmatpush.msra.mxu0 0.0
        %449 = vmatpush.msra.mxu0 0.0
        %450 = vmatpush.msra.mxu0 0.0
        %451 = vmatpush.msra.mxu0 0.0
        %452 = vmatpush.msra.mxu0 %v265
        %453 = vmatmul.f32.gmra.mxu0 %v435
        %v454 = vpop.f32.mrf.mxu0
        %v455 = vadd.f32 0.0, %v454
        %456 = vdwg.mxu0
        %v458 = vsel %vm269, %v431, 0
        %460 = vmatpush.msra.mxu0 0.0
        %461 = vmatpush.msra.mxu0 0.0
        %462 = vmatpush.msra.mxu0 0.0
        %463 = vmatpush.msra.mxu0 0.0
        %464 = vmatpush.msra.mxu0 0.0
        %465 = vmatpush.msra.mxu0 0.0
        %466 = vmatpush.msra.mxu0 0.0
        %467 = vmatpush.msra.mxu0 0.0
        %468 = vmatpush.msra.mxu0 0.0
        %469 = vmatpush.msra.mxu0 0.0
        %470 = vmatpush.msra.mxu0 0.0
        %471 = vmatpush.msra.mxu0 0.0
        %472 = vmatpush.msra.mxu0 0.0
        %473 = vmatpush.msra.mxu0 0.0
        %474 = vmatpush.msra.mxu0 0.0
        %475 = vmatpush.msra.mxu0 %v266
        %476 = vmatmul.f32.gmra.mxu0 %v458
        %v477 = vpop.f32.mrf.mxu0
        %v478 = vadd.f32 0.0, %v477
        %479 = vdwg.mxu0
        %v481 = vsel %vm269, %v432, 0
        %483 = vmatpush.msra.mxu0 0.0
        %484 = vmatpush.msra.mxu0 0.0
        %485 = vmatpush.msra.mxu0 0.0
        %486 = vmatpush.msra.mxu0 0.0
        %487 = vmatpush.msra.mxu0 0.0
        %488 = vmatpush.msra.mxu0 0.0
        %489 = vmatpush.msra.mxu0 0.0
        %490 = vmatpush.msra.mxu0 0.0
        %491 = vmatpush.msra.mxu0 0.0
        %492 = vmatpush.msra.mxu0 0.0
        %493 = vmatpush.msra.mxu0 0.0
        %494 = vmatpush.msra.mxu0 0.0
        %495 = vmatpush.msra.mxu0 0.0
        %496 = vmatpush.msra.mxu0 0.0
        %497 = vmatpush.msra.mxu0 0.0
        %498 = vmatpush.msra.mxu0 %v267
        %499 = vmatmul.f32.gmra.mxu0 %v481
        %v500 = vpop.f32.mrf.mxu0
        %v501 = vadd.f32 0.0, %v500
        %502 = vdwg.mxu0
        %v504 = vsel %vm269, %v433, 0
        %506 = vmatpush.msra.mxu0 0.0
        %507 = vmatpush.msra.mxu0 0.0
        %508 = vmatpush.msra.mxu0 0.0
        %509 = vmatpush.msra.mxu0 0.0
        %510 = vmatpush.msra.mxu0 0.0
        %511 = vmatpush.msra.mxu0 0.0
        %512 = vmatpush.msra.mxu0 0.0
        %513 = vmatpush.msra.mxu0 0.0
        %514 = vmatpush.msra.mxu0 0.0
        %515 = vmatpush.msra.mxu0 0.0
        %516 = vmatpush.msra.mxu0 0.0
        %517 = vmatpush.msra.mxu0 0.0
        %518 = vmatpush.msra.mxu0 0.0
        %519 = vmatpush.msra.mxu0 0.0
        %520 = vmatpush.msra.mxu0 0.0
        %521 = vmatpush.msra.mxu0 %v268
        %522 = vmatmul.f32.gmra.mxu0 %v504
        %v523 = vpop.f32.mrf.mxu0
        %v524 = vadd.f32 0.0, %v523
        %525 = vdwg.mxu0
        %526 = vst.msk [vmem:[%s254] sm:$0xff] %vm269, %v455
        %527 = vst.msk [vmem:[%s254 + $0x8] sm:$0xff] %vm269, %v478
        %528 = vst.msk [vmem:[%s254 + $0x10] sm:$0xff] %vm269, %v501
        %529 = vst.msk [vmem:[%s254 + $0x18] sm:$0xff] %vm269, %v524
        %530 = vst.msk [vmem:[%s231] sm:$0xff] %vm269, %v430
        %531 = vst.msk [vmem:[%s231 + $0x8] sm:$0xff] %vm269, %v431
        %532 = vst.msk [vmem:[%s231 + $0x10] sm:$0xff] %vm269, %v432
        %533 = vst.msk [vmem:[%s231 + $0x18] sm:$0xff] %vm269, %v433
        %s534 = smul.u32 4, %s19
        %p535 = scmp.lt.s32.totalorder %s534, 7
        %s536 = scalar_select %p535, %s534, 7
        %s537 = smul.addr %s536, 8
        %s538 = scalar_lea.vmem %s3, %s537
        %s539 = sand.u32 %s131, 1
        %s540 = scalar_lea.sflag [#allocation3], %s539
        %s541 = sand.u32 %s131, 1
        %s542 = smul.addr %s541, 32
        %s543 = scalar_lea.vmem [#allocation2], %s542
        // Predicated region
        $region33: #{encoder_layer_forward.5} parent=31 // pred_check
          %p544 = pneg %p115
        $region34: #{encoder_layer_forward.5} parent=31 // pred_check_branch
          %546 = sbr.rel (%p544) target = $region36
        $region35: #{encoder_layer_forward.5} parent=31 // pred_region
          %s547 = smul.u32 4, %s19
        $region36: #{encoder_layer_forward.5} parent=31 // pred_fallthru
          _
        // Predicated region
        $region37: #{encoder_layer_forward.5} parent=31 // pred_check
          %p548 = pneg %p141
        $region38: #{encoder_layer_forward.5} parent=31 // pred_check_branch
          %550 = sbr.rel (%p548) target = $region40
        $region39: #{encoder_layer_forward.5} parent=31 // pred_region
          %s551 = smul.u32 4, %s19
          %553 = vsyncadd %s540, 0
          %s554 = smul.addr %s551, 8
          %s555 = scalar_lea.hbm %s4, %s554
          %s556 = sshll.u32 %s543, 4
          %s557 = int_to_ptr.vmem [resolvable:$true] %s556
          %s558 = sshll.u32 %s555, 4
          %s559 = int_to_ptr.hbm [resolvable:$true] %s558
          %564 = dma.vmem_to_hbm [thread:$0]  %s557, 512, %s559, %s540, 128, 128, 8
        $region40: #{encoder_layer_forward.5} parent=31 // pred_fallthru
          _
      $region32: #{encoder_layer_forward.5} parent=5 // pred_fallthru
        _
      %p565 = scmp.le.s32.totalorder 2, %s14
      // Predicated region
      $region41: #{encoder_layer_forward.5} parent=5 // pred_check
        %p566 = pneg %p565
      $region42: #{encoder_layer_forward.5} parent=5 // pred_check_branch
        %568 = sbr.rel (%p566) target = $region44
      $region43: #{encoder_layer_forward.5} parent=5 // pred_region
        %s569 = ssub.s32 %s14, 2
        // Predicated region
        $region45: #{encoder_layer_forward.5} parent=43 // pred_check
          %p570 = pneg %p121
        $region46: #{encoder_layer_forward.5} parent=43 // pred_check_branch
          %572 = sbr.rel (%p570) target = $region48
        $region47: #{encoder_layer_forward.5} parent=43 // pred_region
          %s573 = smul.u32 4, %s20
          %p574 = scmp.lt.s32.totalorder %s573, 7
          %s575 = scalar_select %p574, %s573, 7
          %s576 = smul.addr %s575, 8
          %s577 = scalar_lea.vmem %s3, %s576
        $region48: #{encoder_layer_forward.5} parent=43 // pred_fallthru
          _
        // Predicated region
        $region49: #{encoder_layer_forward.5} parent=43 // pred_check
          %p578 = pneg %p147
        $region50: #{encoder_layer_forward.5} parent=43 // pred_check_branch
          %580 = sbr.rel (%p578) target = $region52
        $region51: #{encoder_layer_forward.5} parent=43 // pred_region
          %s581 = sand.u32 %s132, 1
          %s582 = scalar_lea.sflag [#allocation3], %s581
          %s583 = sand.u32 %s132, 1
          %s584 = smul.addr %s583, 32
          %s585 = scalar_lea.vmem [#allocation2], %s584
          %587 = dma.done %s582, 512
        $region52: #{encoder_layer_forward.5} parent=43 // pred_fallthru
          _
      $region44: #{encoder_layer_forward.5} parent=5 // pred_fallthru
        _
    $region6: #{encoder_layer_forward.5} parent=1 // loop_footer
      %s18 = sadd.s32 1, %s14
    $region7: #{encoder_layer_forward.5} parent=1 // loop_footer_branch
      %13 = sbr.rel target = $region3
    $region8: #{encoder_layer_forward.5} parent=1 // loop_exit
      _
    %588 = vsyncpa [#allocation3], 1
    %s589 = scalar_lea.sflag [#allocation3], 1
    %590 = vsyncpa %s589, 1

// kernel: encoder_layer_forward.4
$region0: #{encoder_layer_forward.4}
  #allocation0 [shape = 'u32[]', space=smem, size = 0x4, offset = 0x4, fixed_abs, tag = 'smem constant byte address 0x4 - core index']
  #allocation1 [shape = 'u32[72,128]{1,0:T(1,128)}', space=vmem, size = 0x9000, scoped, tag = 'internal scratch']
  %s0 = inlined_call_operand.hbm [shape: f32[16,32], index: 0, kind: input, shape index: {}]
  %s1 = inlined_call_operand.hbm [shape: f32[32,96], index: 1, kind: input, shape index: {}]
  %s2 = inlined_call_operand.vmem [shape: f32[1,96], index: 2, kind: input, shape index: {}]
  %s3 = inlined_call_operand.vmem [shape: f32[16,96], index: 3, kind: output, shape index: {}]
  %s4 = sld [smem:[#allocation0]]
  $region30: #{encoder_layer_forward.4} parent=0
    _
  %s6 = ssub.s32 1, %s4
  %s7 = scalar_select 0, %s6, %s4
  $region1: #{encoder_layer_forward.4} parent=0
    #allocation2 [shape = 'u8[8192]{0}', space=vmem, size = 0x2000, scoped, tag = 'input window, operand 0, single buffered']
    #allocation3 [shape = 's32[1]{0}', space=sflag, size = 0x4, scoped, tag = 'scoped memory for encoder_layer_forward.4']
    #allocation4 [shape = 'u8[16384]{0}', space=vmem, size = 0x4000, scoped, tag = 'input window, operand 1, single buffered']
    #allocation5 [shape = 's32[1]{0}', space=sflag, size = 0x4, scoped, tag = 'scoped memory for encoder_layer_forward.4']
    %8 = vsyncpa [#allocation3], 0
    %9 = vsyncpa [#allocation5], 0
    // Predicated region
    $region2: #{encoder_layer_forward.4} parent=1 // pred_check
      _
    $region3: #{encoder_layer_forward.4} parent=1 // pred_check_branch
      %11 = sbr.rel (0) target = $region5
    $region4: #{encoder_layer_forward.4} parent=1 // pred_region
      %13 = vsyncadd [#allocation3], 0
      %s14 = sshll.u32 %s0, 4
      %s15 = int_to_ptr.hbm [resolvable:$true] %s14
      %s16 = sshll.u32 [#allocation2], 4
      %s17 = int_to_ptr.vmem [resolvable:$true] %s16
      %22 = dma.hbm_to_vmem [thread:$0]  %s15, 256, %s17, [#allocation3], 128, 128, 8
    $region5: #{encoder_layer_forward.4} parent=1 // pred_fallthru
      _
    // Predicated region
    $region6: #{encoder_layer_forward.4} parent=1 // pred_check
      _
    $region7: #{encoder_layer_forward.4} parent=1 // pred_check_branch
      %24 = sbr.rel (0) target = $region9
    $region8: #{encoder_layer_forward.4} parent=1 // pred_region
      %26 = vsyncadd [#allocation5], 0
      %s27 = sshll.u32 %s1, 4
      %s28 = int_to_ptr.hbm [resolvable:$true] %s27
      %s29 = sshll.u32 [#allocation4], 4
      %s30 = int_to_ptr.vmem [resolvable:$true] %s29
      %35 = dma.hbm_to_vmem [thread:$0]  %s28, 512, %s30, [#allocation5], 128, 128, 8
    $region9: #{encoder_layer_forward.4} parent=1 // pred_fallthru
      _
    // Predicated region
    $region10: #{encoder_layer_forward.4} parent=1 // pred_check
      _
    $region11: #{encoder_layer_forward.4} parent=1 // pred_check_branch
      %37 = sbr.rel (0) target = $region13
    $region12: #{encoder_layer_forward.4} parent=1 // pred_region
      _
    $region13: #{encoder_layer_forward.4} parent=1 // pred_fallthru
      _
    // Predicated region
    $region14: #{encoder_layer_forward.4} parent=1 // pred_check
      _
    $region15: #{encoder_layer_forward.4} parent=1 // pred_check_branch
      %39 = sbr.rel (0) target = $region17
    $region16: #{encoder_layer_forward.4} parent=1 // pred_region
      %41 = dma.done [#allocation3], 256
    $region17: #{encoder_layer_forward.4} parent=1 // pred_fallthru
      _
    // Predicated region
    $region18: #{encoder_layer_forward.4} parent=1 // pred_check
      _
    $region19: #{encoder_layer_forward.4} parent=1 // pred_check_branch
      %43 = sbr.rel (0) target = $region21
    $region20: #{encoder_layer_forward.4} parent=1 // pred_region
      %45 = dma.done [#allocation5], 512
    $region21: #{encoder_layer_forward.4} parent=1 // pred_fallthru
      _
    %v46 = vld [vmem:[#allocation2] sm:$0xff]
    %v47 = vld [vmem:[#allocation2 + $0x8] sm:$0xff]
    %v48 = vld [vmem:[#allocation4] sm:$0xff]
    %v49 = vld [vmem:[#allocation4 + $0x8] sm:$0xff]
    %v50 = vld [vmem:[#allocation4 + $0x10] sm:$0xff]
    %v51 = vld [vmem:[#allocation4 + $0x18] sm:$0xff]
    %v52 = vld [vmem:[%s2] sm:$0x1]
    %v54 = vperm.slane %v52, 0
    %vm56 = vcmask 261120
    %v58 = vsel %vm56, %v46, 0
    %v61 = vsel %vm56, %v47, 0
    %63 = vmatpush.msra.mxu0 0.0
    %64 = vmatpush.msra.mxu0 0.0
    %65 = vmatpush.msra.mxu0 0.0
    %66 = vmatpush.msra.mxu0 0.0
    %67 = vmatpush.msra.mxu0 0.0
    %68 = vmatpush.msra.mxu0 0.0
    %69 = vmatpush.msra.mxu0 0.0
    %70 = vmatpush.msra.mxu0 0.0
    %71 = vmatpush.msra.mxu0 0.0
    %72 = vmatpush.msra.mxu0 0.0
    %73 = vmatpush.msra.mxu0 0.0
    %74 = vmatpush.msra.mxu0 0.0
    %75 = vmatpush.msra.mxu0 %v51
    %76 = vmatpush.msra.mxu0 %v50
    %77 = vmatpush.msra.mxu0 %v49
    %78 = vmatpush.msra.mxu0 %v48
    %79 = vmatmul.f32.gmra.mxu0 %v58
    %v80 = vpop.f32.mrf.mxu0
    %v81 = vadd.f32 %v54, %v80
    %82 = vmatmul.f32.gmra.mxu0 %v61
    %v83 = vpop.f32.mrf.mxu0
    %v84 = vadd.f32 %v54, %v83
    %85 = vdwg.mxu0
    %vm86 = vcmask 785408
    %87 = vst.msk [vmem:[%s3] sm:$0xff] %vm86, %v81
    %88 = vst.msk [vmem:[%s3 + $0x8] sm:$0xff] %vm86, %v84
    // Predicated region
    $region22: #{encoder_layer_forward.4} parent=1 // pred_check
      _
    $region23: #{encoder_layer_forward.4} parent=1 // pred_check_branch
      %90 = sbr.rel (0) target = $region25
    $region24: #{encoder_layer_forward.4} parent=1 // pred_region
      _
    $region25: #{encoder_layer_forward.4} parent=1 // pred_fallthru
      _
    // Predicated region
    $region26: #{encoder_layer_forward.4} parent=1 // pred_check
      _
    $region27: #{encoder_layer_forward.4} parent=1 // pred_check_branch
      %92 = sbr.rel (0) target = $region29
    $region28: #{encoder_layer_forward.4} parent=1 // pred_region
      _
    $region29: #{encoder_layer_forward.4} parent=1 // pred_fallthru
      _
    %93 = vsyncpa [#allocation3], 1
    %94 = vsyncpa [#allocation5], 1

// kernel: encoder_layer_forward.6
$region0: #{encoder_layer_forward.6}
  #allocation0 [shape = 'u32[]', space=smem, size = 0x4, offset = 0x4, fixed_abs, tag = 'smem constant byte address 0x4 - core index']
  #allocation1 [shape = 'u32[72,128]{1,0:T(1,128)}', space=vmem, size = 0x9000, scoped, tag = 'internal scratch']
  %s0 = inlined_call_operand.vmem [shape: f32[16,32], index: 0, kind: input, shape index: {}]
  %s1 = inlined_call_operand.vmem [shape: f32[32,32], index: 1, kind: input, shape index: {}]
  %s2 = inlined_call_operand.vmem [shape: f32[1,32], index: 2, kind: input, shape index: {}]
  %s3 = inlined_call_operand.vmem [shape: f32[16,32], index: 3, kind: input, shape index: {}]
  %s4 = inlined_call_operand.vmem [shape: f32[1,32], index: 4, kind: input, shape index: {}]
  %s5 = inlined_call_operand.vmem [shape: f32[1,32], index: 5, kind: input, shape index: {}]
  %s6 = inlined_call_operand.vmem [shape: f32[16,32], index: 6, kind: output, shape index: {}]
  %s7 = sld [smem:[#allocation0]]
  $region34: #{encoder_layer_forward.6} parent=0
    _
  %s9 = ssub.s32 1, %s7
  %s10 = scalar_select 0, %s9, %s7
  // Predicated region
  $region2: #{encoder_layer_forward.6} parent=0 // pred_check
    _
  $region3: #{encoder_layer_forward.6} parent=0 // pred_check_branch
    %12 = sbr.rel (0) target = $region5
  $region4: #{encoder_layer_forward.6} parent=0 // pred_region
    _
  $region5: #{encoder_layer_forward.6} parent=0 // pred_fallthru
    _
  // Predicated region
  $region6: #{encoder_layer_forward.6} parent=0 // pred_check
    _
  $region7: #{encoder_layer_forward.6} parent=0 // pred_check_branch
    %14 = sbr.rel (0) target = $region9
  $region8: #{encoder_layer_forward.6} parent=0 // pred_region
    _
  $region9: #{encoder_layer_forward.6} parent=0 // pred_fallthru
    _
  // Predicated region
  $region10: #{encoder_layer_forward.6} parent=0 // pred_check
    _
  $region11: #{encoder_layer_forward.6} parent=0 // pred_check_branch
    %16 = sbr.rel (0) target = $region13
  $region12: #{encoder_layer_forward.6} parent=0 // pred_region
    _
  $region13: #{encoder_layer_forward.6} parent=0 // pred_fallthru
    _
  // Predicated region
  $region14: #{encoder_layer_forward.6} parent=0 // pred_check
    _
  $region15: #{encoder_layer_forward.6} parent=0 // pred_check_branch
    %18 = sbr.rel (0) target = $region17
  $region16: #{encoder_layer_forward.6} parent=0 // pred_region
    _
  $region17: #{encoder_layer_forward.6} parent=0 // pred_fallthru
    _
  // Predicated region
  $region18: #{encoder_layer_forward.6} parent=0 // pred_check
    _
  $region19: #{encoder_layer_forward.6} parent=0 // pred_check_branch
    %20 = sbr.rel (0) target = $region21
  $region20: #{encoder_layer_forward.6} parent=0 // pred_region
    _
  $region21: #{encoder_layer_forward.6} parent=0 // pred_fallthru
    _
  // Predicated region
  $region22: #{encoder_layer_forward.6} parent=0 // pred_check
    _
  $region23: #{encoder_layer_forward.6} parent=0 // pred_check_branch
    %22 = sbr.rel (0) target = $region25
  $region24: #{encoder_layer_forward.6} parent=0 // pred_region
    _
  $region25: #{encoder_layer_forward.6} parent=0 // pred_fallthru
    _
  %v23 = vld [vmem:[%s0] sm:$0xff]
  %v24 = vld [vmem:[%s0 + $0x8] sm:$0xff]
  %v25 = vld [vmem:[%s1] sm:$0xff]
  %v26 = vld [vmem:[%s1 + $0x8] sm:$0xff]
  %v27 = vld [vmem:[%s1 + $0x10] sm:$0xff]
  %v28 = vld [vmem:[%s1 + $0x18] sm:$0xff]
  %v29 = vld [vmem:[%s2] sm:$0x1]
  %v31 = vperm.slane %v29, 0
  %vm33 = vcmask 261120
  %v35 = vsel %vm33, %v23, 0
  %v38 = vsel %vm33, %v24, 0
  %40 = vmatpush.msra.mxu0 0.0
  %41 = vmatpush.msra.mxu0 0.0
  %42 = vmatpush.msra.mxu0 0.0
  %43 = vmatpush.msra.mxu0 0.0
  %44 = vmatpush.msra.mxu0 0.0
  %45 = vmatpush.msra.mxu0 0.0
  %46 = vmatpush.msra.mxu0 0.0
  %47 = vmatpush.msra.mxu0 0.0
  %48 = vmatpush.msra.mxu0 0.0
  %49 = vmatpush.msra.mxu0 0.0
  %50 = vmatpush.msra.mxu0 0.0
  %51 = vmatpush.msra.mxu0 0.0
  %52 = vmatpush.msra.mxu0 %v28
  %53 = vmatpush.msra.mxu0 %v27
  %54 = vmatpush.msra.mxu0 %v26
  %55 = vmatpush.msra.mxu0 %v25
  %56 = vmatmul.f32.gmra.mxu0 %v35
  %v57 = vpop.f32.mrf.mxu0
  %v58 = vadd.f32 %v31, %v57
  %59 = vmatmul.f32.gmra.mxu0 %v38
  %v60 = vpop.f32.mrf.mxu0
  %v61 = vadd.f32 %v31, %v60
  %62 = vdwg.mxu0
  %v63 = vld [vmem:[%s3] sm:$0xff]
  %v64 = vld [vmem:[%s3 + $0x8] sm:$0xff]
  %v65 = vadd.f32 %v63, %v58
  %v66 = vadd.f32 %v64, %v61
  %v67 = vsel %vm33, %v65, 0.0
  %68 = vadd.xlane.f32.xlu0 %v67
  %v69 = vpop.xlane.xlu0 %68
  %v70 = vsel %vm33, %v66, 0.0
  %71 = vadd.xlane.f32.xlu0 %v70
  %v72 = vpop.xlane.xlu0 %71
  %v73 = vrcp.pop 32.0
  %v74 = vmul.f32 32.0, %v73
  %v75 = vsub.f32 1.0, %v74
  %v76 = vmul.f32 %v73, %v75
  %v77 = vadd.f32 %v73, %v76
  %vm78 = vweird.f32 %v73
  %v79 = vsel %vm78, %v73, %v77
  %v80 = vmul.f32 %v69, %v79
  %v81 = vmul.f32 %v72, %v79
  %v82 = vsub.f32 %v65, %v80
  %v83 = vsub.f32 %v66, %v81
  %v84 = vmul.f32 %v82, %v82
  %v85 = vmul.f32 %v83, %v83
  %v86 = vsel %vm33, %v84, 0.0
  %87 = vadd.xlane.f32.xlu0 %v86
  %v88 = vpop.xlane.xlu0 %87
  %v89 = vsel %vm33, %v85, 0.0
  %90 = vadd.xlane.f32.xlu0 %v89
  %v91 = vpop.xlane.xlu0 %90
  %v92 = vmul.f32 %v88, %v79
  %v93 = vmul.f32 %v91, %v79
  %v94 = vadd.f32 %v92, 1e-05
  %v95 = vadd.f32 %v93, 1e-05
  %v96 = vrsqrt.pop %v94
  %v97 = vmul.f32 %v96, %v94
  %v98 = vmul.f32 %v97, %v96
  %v99 = vmul.f32 0.5, %v98
  %v100 = vsub.f32 1.5, %v99
  %v101 = vmul.f32 %v96, %v100
  %vm102 = vweird.f32 %v94
  %vm103 = vweird.f32 %v96
  %vm104 = vmor %vm102, %vm103
  %v105 = vsel %vm104, %v96, %v101
  %v106 = vrsqrt.pop %v95
  %v107 = vmul.f32 %v106, %v95
  %v108 = vmul.f32 %v107, %v106
  %v109 = vmul.f32 0.5, %v108
  %v110 = vsub.f32 1.5, %v109
  %v111 = vmul.f32 %v106, %v110
  %vm112 = vweird.f32 %v95
  %vm113 = vweird.f32 %v106
  %vm114 = vmor %vm112, %vm113
  %v115 = vsel %vm114, %v106, %v111
  %v116 = vmul.f32 %v82, %v105
  %v117 = vmul.f32 %v83, %v115
  %v118 = vld [vmem:[%s4] sm:$0x1]
  %v120 = vperm.slane %v118, 0
  %v122 = vmul.f32 %v116, %v120
  %v123 = vmul.f32 %v117, %v120
  %v124 = vld [vmem:[%s5] sm:$0x1]
  %v126 = vperm.slane %v124, 0
  %v128 = vadd.f32 %v122, %v126
  %v129 = vadd.f32 %v123, %v126
  %130 = vst.msk [vmem:[%s6] sm:$0xff] %vm33, %v128
  %131 = vst.msk [vmem:[%s6 + $0x8] sm:$0xff] %vm33, %v129
  // Predicated region
  $region26: #{encoder_layer_forward.6} parent=0 // pred_check
    _
  $region27: #{encoder_layer_forward.6} parent=0 // pred_check_branch
    %133 = sbr.rel (0) target = $region29
  $region28: #{encoder_layer_forward.6} parent=0 // pred_region
    _
  $region29: #{encoder_layer_forward.6} parent=0 // pred_fallthru
    _
  // Predicated region
  $region30: #{encoder_layer_forward.6} parent=0 // pred_check
    _
  $region31: #{encoder_layer_forward.6} parent=0 // pred_check_branch
    %135 = sbr.rel (0) target = $region33
  $region32: #{encoder_layer_forward.6} parent=0 // pred_region
    _
  $region33: #{encoder_layer_forward.6} parent=0 // pred_fallthru
    _

</llo_original>
